<compile_context>
chip_gen: v6e
topology: v6e:2x2x1
jax: 0.10.0
libtpu: 0.0.40
codegen_flags: <defaults>
</compile_context>

<pallas_src>
import numpy as np
import jax
import jax.numpy as jnp
from jax import lax
from jax.experimental import pallas as pl
from jax.experimental.pallas import tpu as pltpu

NEG = -1e30  # finite "-inf" sentinel, avoids inf-inf NaNs in-kernel


def _round_up(x, m):
    return ((x + m - 1) // m) * m


def _ctc_kernel(acts_ref, ext_ref, llen_ref, alen_ref, cost_ref,
                onehot_ref, lp_ref, alpha_ref):
    # acts_ref:   (B, Tt, C)  raw activations for this time tile
    # ext_ref:    (B, S)      extended label sequence (blank=0), S lane-padded
    # llen_ref:   (B, 1)      label lengths (int32)
    # alen_ref:   (B, 1)      activation lengths (int32)
    # cost_ref:   (B, 1)      output: per-sample CTC loss (written last step)
    # onehot_ref: (B, S, C)   scratch: gather matrix, built once at step 0
    # lp_ref:     (Tt, B, S)  scratch: gathered label log-probs for this tile
    # alpha_ref:  (B, S)      scratch: CTC forward variable, persists over grid
    g = pl.program_id(0)
    n_g = pl.num_programs(0)
    B, Tt, C = acts_ref.shape
    S = ext_ref.shape[1]

    ext = ext_ref[...]                                          # (B, S) int32
    s_idx = lax.broadcasted_iota(jnp.int32, (B, S), 1)
    n_states = 2 * llen_ref[...] + 1                            # (B, 1)
    state_mask = s_idx < n_states
    final_mask = (s_idx == n_states - 1) | (s_idx == n_states - 2)
    ext_m2 = pltpu.roll(ext, 2, 1)                              # ext[s-2] (wrap masked)
    allow2 = (s_idx >= 2) & (ext != 0) & (ext != ext_m2)
    neg = jnp.float32(NEG)

    @pl.when(g == 0)
    def _init():
        c_idx = lax.broadcasted_iota(jnp.int32, (B, S, C), 2)
        onehot_ref[...] = (ext[:, :, None] == c_idx).astype(jnp.float32)
        # alpha at "t = -1": identity at s=0, NEG elsewhere; running the
        # standard recursion at t=0 then reproduces the CTC init exactly.
        alpha_ref[...] = jnp.where(s_idx == 0, jnp.float32(0.0), neg)

    # log-softmax + one-hot gather for the whole tile as per-batch
    # (Tt, C) @ (C, S) MXU matmuls written into lp_ref (Tt, B, S).
    for b in range(B):
        x = acts_ref[b]                                         # (Tt, C)
        m = jnp.max(x, axis=-1, keepdims=True)
        logz = m + jnp.log(jnp.sum(jnp.exp(x - m), axis=-1, keepdims=True))
        logp = x - logz
        lp_ref[:, b, :] = lax.dot_general(
            logp, onehot_ref[b],
            dimension_numbers=(((1,), (1,)), ((), ())),
            precision=lax.Precision.HIGHEST,
            preferred_element_type=jnp.float32)                 # (Tt, S)

    # serial alpha recursion over the tile; alpha is register-resident.
    t0 = g * Tt
    alen = alen_ref[...]                                        # (B, 1) int32

    def body(t, alpha):
        lp = lp_ref[t]                                          # (B, S)
        a1 = jnp.where(s_idx >= 1, pltpu.roll(alpha, 1, 1), neg)    # alpha[s-1]
        a2 = jnp.where(allow2, pltpu.roll(alpha, 2, 1), neg)        # alpha[s-2]
        m = jnp.maximum(jnp.maximum(alpha, a1), a2)
        lse = m + jnp.log(jnp.exp(alpha - m) + jnp.exp(a1 - m) + jnp.exp(a2 - m))
        new = jnp.where(state_mask, lp + lse, neg)
        tmask = (t0 + t) < alen                                 # freeze past act_len
        return jnp.where(tmask, new, alpha)

    alpha = lax.fori_loop(0, Tt, body, alpha_ref[...])
    alpha_ref[...] = alpha

    @pl.when(g == n_g - 1)
    def _final():
        masked = jnp.where(final_mask, alpha, neg)
        m = jnp.max(masked, axis=-1, keepdims=True)
        lse = m + jnp.log(jnp.sum(jnp.exp(masked - m), axis=-1, keepdims=True))
        cost_ref[...] = -lse


def warp_ctc_loss(acts, labels, act_lens, label_lens, size_average=False):
    """Equivalent of warpctc_pytorch.CTCLoss().forward(...). Returns shape (1,)."""
    acts = jnp.asarray(acts, jnp.float32)
    T, B, C = acts.shape
    labels_np = np.asarray(labels).astype(np.int32).reshape(-1)
    act_lens_np = np.asarray(act_lens).astype(np.int32).reshape(-1)
    label_lens_np = np.asarray(label_lens).astype(np.int32).reshape(-1)

    Lmax = int(label_lens_np.max()) if label_lens_np.size else 0
    S = _round_up(2 * Lmax + 1, 128)            # lane-aligned extended-state axis

    # extended label sequence (blank interleaved), flat warp-ctc label layout
    ext = np.zeros((B, S), dtype=np.int32)
    off = 0
    for b in range(B):
        L = int(label_lens_np[b])
        ext[b, 1:2 * L:2] = labels_np[off:off + L]
        off += L

    # Time tiling: keep the double-buffered acts tile under ~20 MiB (v7x-safe),
    # cap at 128, and truncate the grid to the longest activation length.
    T_run = int(min(T, max(int(act_lens_np.max()) if act_lens_np.size else 1, 1)))
    bytes_per_t = B * C * 4
    tt_cap = max(8, (20 * 1024 * 1024) // max(1, 2 * bytes_per_t))
    Tt = int(min(128, tt_cap, _round_up(T_run, 8)))
    Tt = max(8, (Tt // 8) * 8)
    n_t = -(-T_run // Tt)
    T_pad = n_t * Tt

    # (T, B, C) -> (B, T_pad, C): time contiguous per sample, lane dim = C
    acts_bt = jnp.transpose(acts, (1, 0, 2))
    if T_pad <= T:
        acts_bt = acts_bt[:, :T_pad, :]
    else:
        acts_bt = jnp.pad(acts_bt, ((0, 0), (0, T_pad - T), (0, 0)))

    costs = pl.pallas_call(
        _ctc_kernel,
        out_shape=jax.ShapeDtypeStruct((B, 1), jnp.float32),
        grid=(n_t,),
        in_specs=[
            pl.BlockSpec((B, Tt, C), lambda t: (0, t, 0)),   # acts tile
            pl.BlockSpec((B, S), lambda t: (0, 0)),          # extended labels
            pl.BlockSpec((B, 1), lambda t: (0, 0)),          # label lens
            pl.BlockSpec((B, 1), lambda t: (0, 0)),          # act lens
        ],
        out_specs=pl.BlockSpec((B, 1), lambda t: (0, 0)),
        scratch_shapes=[
            pltpu.VMEM((B, S, C), jnp.float32),   # one-hot gather matrix
            pltpu.VMEM((Tt, B, S), jnp.float32),  # per-tile label log-probs
            pltpu.VMEM((B, S), jnp.float32),      # alpha (persists across grid)
        ],
        compiler_params=pltpu.CompilerParams(
            dimension_semantics=("arbitrary",),
            vmem_limit_bytes=64 * 1024 * 1024,
        ),
    )(acts_bt,
      jnp.asarray(ext),
      jnp.asarray(label_lens_np.reshape(B, 1)),
      jnp.asarray(act_lens_np.reshape(B, 1)))

    costs = costs[:, 0]
    # TODO(synk): backward() returning warp-ctc gradients (ctx.grads) is not
    # implemented; only the forward cost is computed.
    if size_average:
        return jnp.reshape(jnp.mean(costs), (1,))
    return jnp.reshape(jnp.sum(costs), (1,))


def _ctc_ref_numpy(acts, labels, act_lens, label_lens):
    """Pure numpy CTC forward (reference) in float64."""
    acts = np.asarray(acts, np.float64)
    T, B, C = acts.shape
    costs = np.zeros(B)
    labels = np.asarray(labels)
    off = 0
    for b in range(B):
        L = int(np.asarray(label_lens)[b])
        Tb = int(np.asarray(act_lens)[b])
        lab = labels[off:off + L]
        off += L
        Sv = 2 * L + 1
        ext = np.zeros(Sv, dtype=np.int64)
        ext[1::2] = lab
        x = acts[:Tb, b, :]
        x = x - x.max(-1, keepdims=True)
        logp = x - np.log(np.exp(x).sum(-1, keepdims=True))
        alpha = np.full(Sv, -np.inf)
        alpha[0] = logp[0, ext[0]]
        if Sv > 1:
            alpha[1] = logp[0, ext[1]]
        for t in range(1, Tb):
            new = np.full(Sv, -np.inf)
            for s in range(Sv):
                terms = [alpha[s]]
                if s >= 1:
                    terms.append(alpha[s - 1])
                if s >= 2 and ext[s] != 0 and ext[s] != ext[s - 2]:
                    terms.append(alpha[s - 2])
                m = max(terms)
                lse = -np.inf if m == -np.inf else m + np.log(
                    np.exp(np.array(terms) - m).sum())
                new[s] = lse + logp[t, ext[s]]
            alpha = new
        fin = [alpha[Sv - 1]] + ([alpha[Sv - 2]] if Sv >= 2 else [])
        m = max(fin)
        costs[b] = -(m + np.log(np.exp(np.array(fin) - m).sum()))
    return costs


if __name__ == "__main__":
    key = jax.random.PRNGKey(0)
    T, B, C = 8, 2, 16                      # seqLength, batch, outputDim (blank=0)
    acts = jax.random.normal(key, (T, B, C), dtype=jnp.float32)
    labels = jnp.array([1, 2, 3, 4, 5], dtype=jnp.int32)   # concatenated targets
    label_lens = jnp.array([3, 2], dtype=jnp.int32)
    act_lens = jnp.array([8, 6], dtype=jnp.int32)

    loss = warp_ctc_loss(acts, labels, act_lens, label_lens, size_average=False)
    loss = jax.block_until_ready(loss)

    ref = _ctc_ref_numpy(np.asarray(acts), np.asarray(labels),
                         np.asarray(act_lens), np.asarray(label_lens)).sum()
    assert loss.shape == (1,)
    assert np.isfinite(np.asarray(loss)).all()
    np.testing.assert_allclose(np.asarray(loss)[0], ref, rtol=1e-3, atol=1e-3)
    print("KERNEL_OK")
</pallas_src>

<mosaic_0001>
module attributes {stable_mosaic.version = 11 : i64} {
  func.func @_ctc_kernel(%arg0: i32, %arg1: memref<2x8x16xf32, #tpu.memory_space<vmem>>, %arg2: memref<2x128xi32, #tpu.memory_space<vmem>>, %arg3: memref<2x1xi32, #tpu.memory_space<vmem>>, %arg4: memref<2x1xi32, #tpu.memory_space<vmem>>, %arg5: memref<2x1xf32, #tpu.memory_space<vmem>>, %arg6: memref<2x128x16xf32, #tpu.memory_space<vmem>>, %arg7: memref<8x2x128xf32, #tpu.memory_space<vmem>>, %arg8: memref<2x128xf32, #tpu.memory_space<vmem>>) attributes {dimension_semantics = [#tpu.dimension_semantics<arbitrary>], iteration_bounds = array<i64: 1>, scalar_prefetch = 0 : i64, scratch_operands = 3 : i64, tpu.core_type = #tpu.core_type<tc>, window_params = [{transform_indices = @transform_0, window_bounds = array<i64: 2, 8, 16>}, {pipeline_mode = #tpu.pipeline_mode<synchronous>, transform_indices = @transform_1, window_bounds = array<i64: 2, 128>}, {pipeline_mode = #tpu.pipeline_mode<synchronous>, transform_indices = @transform_2, window_bounds = array<i64: 2, 1>}, {pipeline_mode = #tpu.pipeline_mode<synchronous>, transform_indices = @transform_3, window_bounds = array<i64: 2, 1>}, {pipeline_mode = #tpu.pipeline_mode<synchronous>, transform_indices = @transform_4, window_bounds = array<i64: 2, 1>}]} {
    %c0 = arith.constant 0 : index
    %c0_0 = arith.constant 0 : index
    %0 = vector.load %arg2[%c0, %c0_0] : memref<2x128xi32, #tpu.memory_space<vmem>>, vector<2x128xi32>
    %1 = tpu.iota {dimensions = array<i32: 1>} : vector<2x128xi32>
    %c0_1 = arith.constant 0 : index
    %c0_2 = arith.constant 0 : index
    %2 = vector.load %arg3[%c0_1, %c0_2] : memref<2x1xi32, #tpu.memory_space<vmem>>, vector<2x1xi32>
    %c2_i32 = arith.constant 2 : i32
    %3 = vector.broadcast %c2_i32 : i32 to vector<2x1xi32>
    %4 = arith.muli %3, %2 : vector<2x1xi32>
    %c1_i32 = arith.constant 1 : i32
    %5 = vector.broadcast %c1_i32 : i32 to vector<2x1xi32>
    %6 = arith.addi %4, %5 : vector<2x1xi32>
    %7 = vector.broadcast %6 : vector<2x1xi32> to vector<2x128xi32>
    %8 = arith.cmpi slt, %1, %7 : vector<2x128xi32>
    %c1_i32_3 = arith.constant 1 : i32
    %9 = vector.broadcast %c1_i32_3 : i32 to vector<2x1xi32>
    %10 = arith.subi %6, %9 : vector<2x1xi32>
    %11 = vector.broadcast %10 : vector<2x1xi32> to vector<2x128xi32>
    %12 = arith.cmpi eq, %1, %11 : vector<2x128xi32>
    %c2_i32_4 = arith.constant 2 : i32
    %13 = vector.broadcast %c2_i32_4 : i32 to vector<2x1xi32>
    %14 = arith.subi %6, %13 : vector<2x1xi32>
    %15 = vector.broadcast %14 : vector<2x1xi32> to vector<2x128xi32>
    %16 = arith.cmpi eq, %1, %15 : vector<2x128xi32>
    %17 = arith.ori %12, %16 : vector<2x128xi1>
    %c2_i32_5 = arith.constant 2 : i32
    %18 = tpu.dynamic_rotate %0 by %c2_i32_5 dim 1 : vector<2x128xi32>, i32 -> vector<2x128xi32>
    %c2_i32_6 = arith.constant 2 : i32
    %19 = vector.broadcast %c2_i32_6 : i32 to vector<2x128xi32>
    %20 = arith.cmpi sge, %1, %19 : vector<2x128xi32>
    %c0_i32 = arith.constant 0 : i32
    %21 = vector.broadcast %c0_i32 : i32 to vector<2x128xi32>
    %22 = arith.cmpi ne, %0, %21 : vector<2x128xi32>
    %23 = arith.andi %20, %22 : vector<2x128xi1>
    %24 = arith.cmpi ne, %0, %18 : vector<2x128xi32>
    %25 = arith.andi %23, %24 : vector<2x128xi1>
    %c0_i32_7 = arith.constant 0 : i32
    %26 = arith.cmpi eq, %arg0, %c0_i32_7 : i32
    %27 = arith.extui %26 : i1 to i32
    %cst = arith.constant -1.000000e+30 : f32
    %c0_i32_8 = arith.constant 0 : i32
    %28 = arith.cmpi ne, %27, %c0_i32_8 : i32
    scf.if %28 {
      %76 = tpu.iota {dimensions = array<i32: 2>} : vector<2x128x16xi32>
      %77 = vector.shape_cast %0 : vector<2x128xi32> to vector<2x128x1xi32>
      %78 = vector.broadcast %77 : vector<2x128x1xi32> to vector<2x128x16xi32>
      %79 = arith.cmpi eq, %78, %76 : vector<2x128x16xi32>
      %80 = arith.extui %79 : vector<2x128x16xi1> to vector<2x128x16xi32>
      %81 = arith.sitofp %80 : vector<2x128x16xi32> to vector<2x128x16xf32>
      %c0_46 = arith.constant 0 : index
      %c0_47 = arith.constant 0 : index
      %c0_48 = arith.constant 0 : index
      %82 = vector.load %arg6[%c0_46, %c0_47, %c0_48] : memref<2x128x16xf32, #tpu.memory_space<vmem>>, vector<2x128x16xf32>
      tpu.vector_store %arg6[%c0_46, %c0_47, %c0_48], %81 {strides = array<i32>} : memref<2x128x16xf32, #tpu.memory_space<vmem>>, vector<2x128x16xf32>,
      %c0_i32_49 = arith.constant 0 : i32
      %83 = vector.broadcast %c0_i32_49 : i32 to vector<2x128xi32>
      %84 = arith.cmpi eq, %1, %83 : vector<2x128xi32>
      %cst_50 = arith.constant 0.000000e+00 : f32
      %85 = vector.broadcast %cst_50 : f32 to vector<2x128xf32>
      %86 = vector.broadcast %cst : f32 to vector<2x128xf32>
      %87 = arith.select %84, %85, %86 : vector<2x128xi1>, vector<2x128xf32>
      %c0_51 = arith.constant 0 : index
      %c0_52 = arith.constant 0 : index
      %88 = vector.load %arg8[%c0_51, %c0_52] : memref<2x128xf32, #tpu.memory_space<vmem>>, vector<2x128xf32>
      tpu.vector_store %arg8[%c0_51, %c0_52], %87 {strides = array<i32>} : memref<2x128xf32, #tpu.memory_space<vmem>>, vector<2x128xf32>,
    } else {
    }
    %c0_9 = arith.constant 0 : index
    %c0_10 = arith.constant 0 : index
    %c0_11 = arith.constant 0 : index
    %29 = vector.load %arg1[%c0_9, %c0_10, %c0_11] : memref<2x8x16xf32, #tpu.memory_space<vmem>>, vector<1x8x16xf32>
    %30 = vector.shape_cast %29 : vector<1x8x16xf32> to vector<8x16xf32>
    %cst_12 = arith.constant dense<0xFF800000> : vector<8xf32>
    %31 = vector.multi_reduction <maximumf>, %30, %cst_12 [1] : vector<8x16xf32> to vector<8xf32>
    %32 = vector.shape_cast %31 : vector<8xf32> to vector<8x1xf32>
    %33 = vector.broadcast %32 : vector<8x1xf32> to vector<8x16xf32>
    %34 = arith.subf %30, %33 : vector<8x16xf32>
    %35 = math.exp %34 : vector<8x16xf32>
    %cst_13 = arith.constant dense<0.000000e+00> : vector<8xf32>
    %36 = vector.multi_reduction <add>, %35, %cst_13 [1] : vector<8x16xf32> to vector<8xf32>
    %37 = vector.shape_cast %36 : vector<8xf32> to vector<8x1xf32>
    %38 = math.log %37 : vector<8x1xf32>
    %39 = arith.addf %32, %38 : vector<8x1xf32>
    %40 = vector.broadcast %39 : vector<8x1xf32> to vector<8x16xf32>
    %41 = arith.subf %30, %40 : vector<8x16xf32>
    %c0_14 = arith.constant 0 : index
    %c0_15 = arith.constant 0 : index
    %c0_16 = arith.constant 0 : index
    %42 = vector.load %arg6[%c0_14, %c0_15, %c0_16] : memref<2x128x16xf32, #tpu.memory_space<vmem>>, vector<1x128x16xf32>
    %43 = vector.shape_cast %42 : vector<1x128x16xf32> to vector<128x16xf32>
    %cst_17 = arith.constant dense<0.000000e+00> : vector<8x128xf32>
    %44 = tpu.matmul %41, %43, %cst_17 {dimension_numbers = #tpu.dot_dimension_numbers<[1], [1], [0], [0], [0, 0, 1, 0], [], []>, precision = #tpu.contract_precision<fp32>} : vector<8x16xf32>, vector<128x16xf32>, vector<8x128xf32> -> vector<8x128xf32>
    %c0_18 = arith.constant 0 : index
    %c0_19 = arith.constant 0 : index
    %c0_20 = arith.constant 0 : index
    %45 = vector.load %arg7[%c0_18, %c0_19, %c0_20] : memref<8x2x128xf32, #tpu.memory_space<vmem>>, vector<8x1x128xf32>
    %46 = vector.shape_cast %45 : vector<8x1x128xf32> to vector<8x128xf32>
    %47 = vector.shape_cast %44 : vector<8x128xf32> to vector<8x1x128xf32>
    tpu.vector_store %arg7[%c0_18, %c0_19, %c0_20], %47 {strides = array<i32>} : memref<8x2x128xf32, #tpu.memory_space<vmem>>, vector<8x1x128xf32>,
    %c1 = arith.constant 1 : index
    %c0_21 = arith.constant 0 : index
    %c0_22 = arith.constant 0 : index
    %48 = vector.load %arg1[%c1, %c0_21, %c0_22] : memref<2x8x16xf32, #tpu.memory_space<vmem>>, vector<1x8x16xf32>
    %49 = vector.shape_cast %48 : vector<1x8x16xf32> to vector<8x16xf32>
    %cst_23 = arith.constant dense<0xFF800000> : vector<8xf32>
    %50 = vector.multi_reduction <maximumf>, %49, %cst_23 [1] : vector<8x16xf32> to vector<8xf32>
    %51 = vector.shape_cast %50 : vector<8xf32> to vector<8x1xf32>
    %52 = vector.broadcast %51 : vector<8x1xf32> to vector<8x16xf32>
    %53 = arith.subf %49, %52 : vector<8x16xf32>
    %54 = math.exp %53 : vector<8x16xf32>
    %cst_24 = arith.constant dense<0.000000e+00> : vector<8xf32>
    %55 = vector.multi_reduction <add>, %54, %cst_24 [1] : vector<8x16xf32> to vector<8xf32>
    %56 = vector.shape_cast %55 : vector<8xf32> to vector<8x1xf32>
    %57 = math.log %56 : vector<8x1xf32>
    %58 = arith.addf %51, %57 : vector<8x1xf32>
    %59 = vector.broadcast %58 : vector<8x1xf32> to vector<8x16xf32>
    %60 = arith.subf %49, %59 : vector<8x16xf32>
    %c1_25 = arith.constant 1 : index
    %c0_26 = arith.constant 0 : index
    %c0_27 = arith.constant 0 : index
    %61 = vector.load %arg6[%c1_25, %c0_26, %c0_27] : memref<2x128x16xf32, #tpu.memory_space<vmem>>, vector<1x128x16xf32>
    %62 = vector.shape_cast %61 : vector<1x128x16xf32> to vector<128x16xf32>
    %cst_28 = arith.constant dense<0.000000e+00> : vector<8x128xf32>
    %63 = tpu.matmul %60, %62, %cst_28 {dimension_numbers = #tpu.dot_dimension_numbers<[1], [1], [0], [0], [0, 0, 1, 0], [], []>, precision = #tpu.contract_precision<fp32>} : vector<8x16xf32>, vector<128x16xf32>, vector<8x128xf32> -> vector<8x128xf32>
    %c0_29 = arith.constant 0 : index
    %c1_30 = arith.constant 1 : index
    %c0_31 = arith.constant 0 : index
    %64 = vector.load %arg7[%c0_29, %c1_30, %c0_31] : memref<8x2x128xf32, #tpu.memory_space<vmem>>, vector<8x1x128xf32>
    %65 = vector.shape_cast %64 : vector<8x1x128xf32> to vector<8x128xf32>
    %66 = vector.shape_cast %63 : vector<8x128xf32> to vector<8x1x128xf32>
    tpu.vector_store %arg7[%c0_29, %c1_30, %c0_31], %66 {strides = array<i32>} : memref<8x2x128xf32, #tpu.memory_space<vmem>>, vector<8x1x128xf32>,
    %c8_i32 = arith.constant 8 : i32
    %67 = arith.muli %arg0, %c8_i32 : i32
    %c0_32 = arith.constant 0 : index
    %c0_33 = arith.constant 0 : index
    %68 = vector.load %arg4[%c0_32, %c0_33] : memref<2x1xi32, #tpu.memory_space<vmem>>, vector<2x1xi32>
    %c0_34 = arith.constant 0 : index
    %c0_35 = arith.constant 0 : index
    %69 = vector.load %arg8[%c0_34, %c0_35] : memref<2x128xf32, #tpu.memory_space<vmem>>, vector<2x128xf32>
    %cst_36 = arith.constant -1.000000e+30 : f32
    %c0_i32_37 = arith.constant 0 : i32
    %c8_i32_38 = arith.constant 8 : i32
    %70 = arith.addi %c0_i32_37, %c8_i32_38 : i32
    %c1_i32_39 = arith.constant 1 : i32
    %71 = scf.for %arg9 = %c0_i32_37 to %70 step %c1_i32_39 iter_args(%arg10 = %69) -> (vector<2x128xf32>)  : i32 {
      %76 = arith.index_cast %arg9 : i32 to index
      %c0_46 = arith.constant 0 : index
      %c0_47 = arith.constant 0 : index
      %77 = vector.load %arg7[%76, %c0_46, %c0_47] : memref<8x2x128xf32, #tpu.memory_space<vmem>>, vector<1x2x128xf32>
      %78 = vector.shape_cast %77 : vector<1x2x128xf32> to vector<2x128xf32>
      %c1_i32_48 = arith.constant 1 : i32
      %79 = vector.broadcast %c1_i32_48 : i32 to vector<2x128xi32>
      %80 = arith.cmpi sge, %1, %79 : vector<2x128xi32>
      %c1_i32_49 = arith.constant 1 : i32
      %81 = tpu.dynamic_rotate %arg10 by %c1_i32_49 dim 1 : vector<2x128xf32>, i32 -> vector<2x128xf32>
      %82 = vector.broadcast %cst_36 : f32 to vector<2x128xf32>
      %83 = arith.select %80, %81, %82 : vector<2x128xi1>, vector<2x128xf32>
      %c2_i32_50 = arith.constant 2 : i32
      %84 = tpu.dynamic_rotate %arg10 by %c2_i32_50 dim 1 : vector<2x128xf32>, i32 -> vector<2x128xf32>
      %85 = vector.broadcast %cst_36 : f32 to vector<2x128xf32>
      %86 = arith.select %25, %84, %85 : vector<2x128xi1>, vector<2x128xf32>
      %87 = arith.maximumf %arg10, %83 : vector<2x128xf32>
      %88 = arith.maximumf %87, %86 : vector<2x128xf32>
      %89 = arith.subf %arg10, %88 : vector<2x128xf32>
      %90 = math.exp %89 : vector<2x128xf32>
      %91 = arith.subf %83, %88 : vector<2x128xf32>
      %92 = math.exp %91 : vector<2x128xf32>
      %93 = arith.addf %90, %92 : vector<2x128xf32>
      %94 = arith.subf %86, %88 : vector<2x128xf32>
      %95 = math.exp %94 : vector<2x128xf32>
      %96 = arith.addf %93, %95 : vector<2x128xf32>
      %97 = math.log %96 : vector<2x128xf32>
      %98 = arith.addf %88, %97 : vector<2x128xf32>
      %99 = arith.addf %78, %98 : vector<2x128xf32>
      %100 = vector.broadcast %cst_36 : f32 to vector<2x128xf32>
      %101 = arith.select %8, %99, %100 : vector<2x128xi1>, vector<2x128xf32>
      %102 = arith.addi %67, %arg9 : i32
      %103 = vector.broadcast %102 : i32 to vector<2x1xi32>
      %104 = arith.cmpi slt, %103, %68 : vector<2x1xi32>
      %105 = vector.shape_cast %104 : vector<2x1xi1> to vector<2x1xi1>
      %106 = vector.broadcast %105 : vector<2x1xi1> to vector<2x128xi1>
      %107 = arith.select %106, %101, %arg10 : vector<2x128xi1>, vector<2x128xf32>
      scf.yield %107 : vector<2x128xf32>
    }
    %c8_i32_40 = arith.constant 8 : i32
    %c0_41 = arith.constant 0 : index
    %c0_42 = arith.constant 0 : index
    %72 = vector.load %arg8[%c0_41, %c0_42] : memref<2x128xf32, #tpu.memory_space<vmem>>, vector<2x128xf32>
    tpu.vector_store %arg8[%c0_41, %c0_42], %71 {strides = array<i32>} : memref<2x128xf32, #tpu.memory_space<vmem>>, vector<2x128xf32>,
    %c0_i32_43 = arith.constant 0 : i32
    %73 = arith.cmpi eq, %arg0, %c0_i32_43 : i32
    %74 = arith.extui %73 : i1 to i32
    %cst_44 = arith.constant -1.000000e+30 : f32
    %c0_i32_45 = arith.constant 0 : i32
    %75 = arith.cmpi ne, %74, %c0_i32_45 : i32
    scf.if %75 {
      %76 = vector.broadcast %cst_44 : f32 to vector<2x128xf32>
      %77 = arith.select %17, %71, %76 : vector<2x128xi1>, vector<2x128xf32>
      %cst_46 = arith.constant dense<0xFF800000> : vector<2xf32>
      %78 = vector.multi_reduction <maximumf>, %77, %cst_46 [1] : vector<2x128xf32> to vector<2xf32>
      %79 = vector.shape_cast %78 : vector<2xf32> to vector<2x1xf32>
      %80 = vector.broadcast %79 : vector<2x1xf32> to vector<2x128xf32>
      %81 = arith.subf %77, %80 : vector<2x128xf32>
      %82 = math.exp %81 : vector<2x128xf32>
      %cst_47 = arith.constant dense<0.000000e+00> : vector<2xf32>
      %83 = vector.multi_reduction <add>, %82, %cst_47 [1] : vector<2x128xf32> to vector<2xf32>
      %84 = vector.shape_cast %83 : vector<2xf32> to vector<2x1xf32>
      %85 = math.log %84 : vector<2x1xf32>
      %86 = arith.addf %79, %85 : vector<2x1xf32>
      %cst_48 = arith.constant 0.000000e+00 : f32
      %87 = vector.broadcast %cst_48 : f32 to vector<2x1xf32>
      %88 = arith.subf %87, %86 : vector<2x1xf32>
      %c0_49 = arith.constant 0 : index
      %c0_50 = arith.constant 0 : index
      %89 = vector.load %arg5[%c0_49, %c0_50] : memref<2x1xf32, #tpu.memory_space<vmem>>, vector<2x1xf32>
      tpu.vector_store %arg5[%c0_49, %c0_50], %88 {strides = array<i32>} : memref<2x1xf32, #tpu.memory_space<vmem>>, vector<2x1xf32>,
    } else {
    }
    return
  }
  func.func @transform_0(%arg0: i32) -> (i32, i32, i32) {
    %c0_i32 = arith.constant 0 : i32
    %c0_i32_0 = arith.constant 0 : i32
    %c0_i32_1 = arith.constant 0 : i32
    return %c0_i32, %arg0, %c0_i32_0 : i32, i32, i32
  }
  func.func @transform_1(%arg0: i32) -> (i32, i32) {
    %c0_i32 = arith.constant 0 : i32
    %c0_i32_0 = arith.constant 0 : i32
    %c0_i32_1 = arith.constant 0 : i32
    return %c0_i32, %c0_i32_0 : i32, i32
  }
  func.func @transform_2(%arg0: i32) -> (i32, i32) {
    %c0_i32 = arith.constant 0 : i32
    %c0_i32_0 = arith.constant 0 : i32
    %c0_i32_1 = arith.constant 0 : i32
    return %c0_i32, %c0_i32_0 : i32, i32
  }
  func.func @transform_3(%arg0: i32) -> (i32, i32) {
    %c0_i32 = arith.constant 0 : i32
    %c0_i32_0 = arith.constant 0 : i32
    %c0_i32_1 = arith.constant 0 : i32
    return %c0_i32, %c0_i32_0 : i32, i32
  }
  func.func @transform_4(%arg0: i32) -> (i32, i32) {
    %c0_i32 = arith.constant 0 : i32
    %c0_i32_0 = arith.constant 0 : i32
    %c0_i32_1 = arith.constant 0 : i32
    return %c0_i32, %c0_i32_0 : i32, i32
  }
}

</mosaic_0001>

<llo_original>
// kernel: tpu_custom_call.1
$region0: #{tpu_custom_call.1}
  #allocation0 [shape = 'u32[]', space=smem, size = 0x4, offset = 0x4, fixed_abs, tag = 'smem constant byte address 0x4 - core index']
  #allocation1 [shape = 'u32[144,128]{1,0:T(1,128)}', space=vmem, size = 0x12000, scoped, tag = 'internal scratch']
  #allocation2 [shape = 'f32[2,128,16]{2,1,0:T(8,128)}', space=vmem, size = 0x20000, scoped, tag = 'scratch operand']
  #allocation3 [shape = 'f32[8,2,128]{2,1,0:T(2,128)}', space=vmem, size = 0x2000, scoped, tag = 'scratch operand']
  #allocation4 [shape = 'f32[2,128]{1,0:T(2,128)}', space=vmem, size = 0x400, scoped, tag = 'scratch operand']
  %s0 = inlined_call_operand.hbm [shape: f32[2,8,16], index: 0, kind: input, shape index: {}]
  %s1 = inlined_call_operand.vmem [shape: s32[2,128], index: 1, kind: input, shape index: {}]
  %s2 = inlined_call_operand.vmem [shape: s32[2,1], index: 2, kind: input, shape index: {}]
  %s3 = inlined_call_operand.vmem [shape: s32[2,1], index: 3, kind: input, shape index: {}]
  %s4 = inlined_call_operand.vmem [shape: f32[2,1], index: 4, kind: output, shape index: {}]
  %s5 = sld [smem:[#allocation0]]
  $region45: #{tpu_custom_call.1} parent=0
    _
  %s7 = ssub.s32 1, %s5
  %s8 = scalar_select 0, %s7, %s5
  $region1: #{tpu_custom_call.1} parent=0
    #allocation5 [shape = 'u8[8192]{0}', space=vmem, size = 0x2000, scoped, tag = 'input window, operand 0, single buffered']
    #allocation6 [shape = 's32[1]{0}', space=sflag, size = 0x4, scoped, tag = 'scoped memory for tpu_custom_call.1']
    %9 = vsyncpa [#allocation6], 0
    // Predicated region
    $region2: #{tpu_custom_call.1} parent=1 // pred_check
      _
    $region3: #{tpu_custom_call.1} parent=1 // pred_check_branch
      %11 = sbr.rel (0) target = $region5
    $region4: #{tpu_custom_call.1} parent=1 // pred_region
      %s13 = ssub.s32 256, 256
      %14 = vsyncadd [#allocation6], %s13
      %s15 = sshll.u32 [#allocation5], 4
      %s16 = int_to_ptr.vmem [resolvable:$true] %s15
      %21 = dma.hbm_to_vmem [thread:$0]  %s0, 256, %s16, [#allocation6], 128, 128, 8
    $region5: #{tpu_custom_call.1} parent=1 // pred_fallthru
      _
    // Predicated region
    $region6: #{tpu_custom_call.1} parent=1 // pred_check
      _
    $region7: #{tpu_custom_call.1} parent=1 // pred_check_branch
      %23 = sbr.rel (0) target = $region9
    $region8: #{tpu_custom_call.1} parent=1 // pred_region
      _
    $region9: #{tpu_custom_call.1} parent=1 // pred_fallthru
      _
    // Predicated region
    $region10: #{tpu_custom_call.1} parent=1 // pred_check
      _
    $region11: #{tpu_custom_call.1} parent=1 // pred_check_branch
      %25 = sbr.rel (0) target = $region13
    $region12: #{tpu_custom_call.1} parent=1 // pred_region
      _
    $region13: #{tpu_custom_call.1} parent=1 // pred_fallthru
      _
    // Predicated region
    $region14: #{tpu_custom_call.1} parent=1 // pred_check
      _
    $region15: #{tpu_custom_call.1} parent=1 // pred_check_branch
      %27 = sbr.rel (0) target = $region17
    $region16: #{tpu_custom_call.1} parent=1 // pred_region
      _
    $region17: #{tpu_custom_call.1} parent=1 // pred_fallthru
      _
    // Predicated region
    $region18: #{tpu_custom_call.1} parent=1 // pred_check
      _
    $region19: #{tpu_custom_call.1} parent=1 // pred_check_branch
      %29 = sbr.rel (0) target = $region21
    $region20: #{tpu_custom_call.1} parent=1 // pred_region
      %30 = dma.done [#allocation6], 256
    $region21: #{tpu_custom_call.1} parent=1 // pred_fallthru
      _
    %v31 = vld [vmem:[%s1] sm:$0x3]
    %v32 = vlaneseq
    %v33 = vand.u32 %v32, 127
    %v34 = vld [vmem:[%s2] sm:$0x3]
    %v35 = vmul.u32 %v34, 2
    %v36 = vadd.s32 %v35, 1
    %37 = vset.pattern.permute.xlu0 0
    %38 = vperm.xlu0 %37, %v36
    %v39 = vpop.permute.xlu0 %38
    %vm40 = vcmp.lt.s32.totalorder %v33, %v39
    %41 = vset.pattern.permute.xlu0 0
    %42 = vperm.xlu0 %41, %v35
    %v43 = vpop.permute.xlu0 %42
    %vm44 = vcmp.eq.s32.totalorder %v33, %v43
    %v45 = vsub.s32 %v36, 2
    %46 = vset.pattern.permute.xlu0 0
    %47 = vperm.xlu0 %46, %v45
    %v48 = vpop.permute.xlu0 %47
    %vm49 = vcmp.eq.s32.totalorder %v33, %v48
    %vm50 = vmor %vm44, %vm49
    %51 = vrot.lane.b32.xlu0 %v31, 2
    %v52 = vpop.permute.xlu0 %51
    %vm53 = vcmp.ge.s32.totalorder %v33, 2
    %vm54 = vcmp.ne.s32.totalorder %v31, 0
    %vm55 = vmand %vm53, %vm54
    %vm56 = vcmp.ne.s32.totalorder %v31, %v52
    %vm57 = vmand %vm55, %vm56
    %p58 = scmp.eq.s32.totalorder 0, 0
    // Predicated region
    $region22: #{tpu_custom_call.1} parent=1 // pred_check
      %p59 = pneg %p58
    $region23: #{tpu_custom_call.1} parent=1 // pred_check_branch
      %61 = sbr.rel (%p59) target = $region25
    $region24: #{tpu_custom_call.1} parent=1 // pred_region
      %v62 = vlaneseq
      %v63 = vshrl.u32 %v62, 7
      %v64 = vsub.s32 0, %v63
      %v65 = vrot.slane %v31, %v64
      %67 = vbcast.lane.b32.xlu0 %v65, 256
      %v68 = vpop.permute.xlu0 %67
      %s70 = sor.u32 256, 8
      %71 = vbcast.lane.b32.xlu0 %v65, %s70
      %v72 = vpop.permute.xlu0 %71
      %s74 = sor.u32 256, 16
      %75 = vbcast.lane.b32.xlu0 %v65, %s74
      %v76 = vpop.permute.xlu0 %75
      %s78 = sor.u32 256, 24
      %79 = vbcast.lane.b32.xlu0 %v65, %s78
      %v80 = vpop.permute.xlu0 %79
      %s82 = sor.u32 256, 32
      %83 = vbcast.lane.b32.xlu0 %v65, %s82
      %v84 = vpop.permute.xlu0 %83
      %s86 = sor.u32 256, 40
      %87 = vbcast.lane.b32.xlu0 %v65, %s86
      %v88 = vpop.permute.xlu0 %87
      %s90 = sor.u32 256, 48
      %91 = vbcast.lane.b32.xlu0 %v65, %s90
      %v92 = vpop.permute.xlu0 %91
      %s94 = sor.u32 256, 56
      %95 = vbcast.lane.b32.xlu0 %v65, %s94
      %v96 = vpop.permute.xlu0 %95
      %s98 = sor.u32 256, 64
      %99 = vbcast.lane.b32.xlu0 %v65, %s98
      %v100 = vpop.permute.xlu0 %99
      %s102 = sor.u32 256, 72
      %103 = vbcast.lane.b32.xlu0 %v65, %s102
      %v104 = vpop.permute.xlu0 %103
      %s106 = sor.u32 256, 80
      %107 = vbcast.lane.b32.xlu0 %v65, %s106
      %v108 = vpop.permute.xlu0 %107
      %s110 = sor.u32 256, 88
      %111 = vbcast.lane.b32.xlu0 %v65, %s110
      %v112 = vpop.permute.xlu0 %111
      %s114 = sor.u32 256, 96
      %115 = vbcast.lane.b32.xlu0 %v65, %s114
      %v116 = vpop.permute.xlu0 %115
      %s118 = sor.u32 256, 104
      %119 = vbcast.lane.b32.xlu0 %v65, %s118
      %v120 = vpop.permute.xlu0 %119
      %s122 = sor.u32 256, 112
      %123 = vbcast.lane.b32.xlu0 %v65, %s122
      %v124 = vpop.permute.xlu0 %123
      %s126 = sor.u32 256, 120
      %127 = vbcast.lane.b32.xlu0 %v65, %s126
      %v128 = vpop.permute.xlu0 %127
      %v129 = vlaneseq
      %v130 = vshrl.u32 %v129, 7
      %v131 = vsub.s32 1, %v130
      %v132 = vrot.slane %v31, %v131
      %134 = vbcast.lane.b32.xlu0 %v132, 256
      %v135 = vpop.permute.xlu0 %134
      %s137 = sor.u32 256, 8
      %138 = vbcast.lane.b32.xlu0 %v132, %s137
      %v139 = vpop.permute.xlu0 %138
      %s141 = sor.u32 256, 16
      %142 = vbcast.lane.b32.xlu0 %v132, %s141
      %v143 = vpop.permute.xlu0 %142
      %s145 = sor.u32 256, 24
      %146 = vbcast.lane.b32.xlu0 %v132, %s145
      %v147 = vpop.permute.xlu0 %146
      %s149 = sor.u32 256, 32
      %150 = vbcast.lane.b32.xlu0 %v132, %s149
      %v151 = vpop.permute.xlu0 %150
      %s153 = sor.u32 256, 40
      %154 = vbcast.lane.b32.xlu0 %v132, %s153
      %v155 = vpop.permute.xlu0 %154
      %s157 = sor.u32 256, 48
      %158 = vbcast.lane.b32.xlu0 %v132, %s157
      %v159 = vpop.permute.xlu0 %158
      %s161 = sor.u32 256, 56
      %162 = vbcast.lane.b32.xlu0 %v132, %s161
      %v163 = vpop.permute.xlu0 %162
      %s165 = sor.u32 256, 64
      %166 = vbcast.lane.b32.xlu0 %v132, %s165
      %v167 = vpop.permute.xlu0 %166
      %s169 = sor.u32 256, 72
      %170 = vbcast.lane.b32.xlu0 %v132, %s169
      %v171 = vpop.permute.xlu0 %170
      %s173 = sor.u32 256, 80
      %174 = vbcast.lane.b32.xlu0 %v132, %s173
      %v175 = vpop.permute.xlu0 %174
      %s177 = sor.u32 256, 88
      %178 = vbcast.lane.b32.xlu0 %v132, %s177
      %v179 = vpop.permute.xlu0 %178
      %s181 = sor.u32 256, 96
      %182 = vbcast.lane.b32.xlu0 %v132, %s181
      %v183 = vpop.permute.xlu0 %182
      %s185 = sor.u32 256, 104
      %186 = vbcast.lane.b32.xlu0 %v132, %s185
      %v187 = vpop.permute.xlu0 %186
      %s189 = sor.u32 256, 112
      %190 = vbcast.lane.b32.xlu0 %v132, %s189
      %v191 = vpop.permute.xlu0 %190
      %s193 = sor.u32 256, 120
      %194 = vbcast.lane.b32.xlu0 %v132, %s193
      %v195 = vpop.permute.xlu0 %194
      %vm196 = vcmp.eq.s32.totalorder %v68, %v33
      %vm197 = vcmp.eq.s32.totalorder %v72, %v33
      %vm198 = vcmp.eq.s32.totalorder %v76, %v33
      %vm199 = vcmp.eq.s32.totalorder %v80, %v33
      %vm200 = vcmp.eq.s32.totalorder %v84, %v33
      %vm201 = vcmp.eq.s32.totalorder %v88, %v33
      %vm202 = vcmp.eq.s32.totalorder %v92, %v33
      %vm203 = vcmp.eq.s32.totalorder %v96, %v33
      %vm204 = vcmp.eq.s32.totalorder %v100, %v33
      %vm205 = vcmp.eq.s32.totalorder %v104, %v33
      %vm206 = vcmp.eq.s32.totalorder %v108, %v33
      %vm207 = vcmp.eq.s32.totalorder %v112, %v33
      %vm208 = vcmp.eq.s32.totalorder %v116, %v33
      %vm209 = vcmp.eq.s32.totalorder %v120, %v33
      %vm210 = vcmp.eq.s32.totalorder %v124, %v33
      %vm211 = vcmp.eq.s32.totalorder %v128, %v33
      %vm212 = vcmp.eq.s32.totalorder %v135, %v33
      %vm213 = vcmp.eq.s32.totalorder %v139, %v33
      %vm214 = vcmp.eq.s32.totalorder %v143, %v33
      %vm215 = vcmp.eq.s32.totalorder %v147, %v33
      %vm216 = vcmp.eq.s32.totalorder %v151, %v33
      %vm217 = vcmp.eq.s32.totalorder %v155, %v33
      %vm218 = vcmp.eq.s32.totalorder %v159, %v33
      %vm219 = vcmp.eq.s32.totalorder %v163, %v33
      %vm220 = vcmp.eq.s32.totalorder %v167, %v33
      %vm221 = vcmp.eq.s32.totalorder %v171, %v33
      %vm222 = vcmp.eq.s32.totalorder %v175, %v33
      %vm223 = vcmp.eq.s32.totalorder %v179, %v33
      %vm224 = vcmp.eq.s32.totalorder %v183, %v33
      %vm225 = vcmp.eq.s32.totalorder %v187, %v33
      %vm226 = vcmp.eq.s32.totalorder %v191, %v33
      %vm227 = vcmp.eq.s32.totalorder %v195, %v33
      %v228 = vsel %vm196, 1, 0
      %v229 = vsel %vm197, 1, 0
      %v230 = vsel %vm198, 1, 0
      %v231 = vsel %vm199, 1, 0
      %v232 = vsel %vm200, 1, 0
      %v233 = vsel %vm201, 1, 0
      %v234 = vsel %vm202, 1, 0
      %v235 = vsel %vm203, 1, 0
      %v236 = vsel %vm204, 1, 0
      %v237 = vsel %vm205, 1, 0
      %v238 = vsel %vm206, 1, 0
      %v239 = vsel %vm207, 1, 0
      %v240 = vsel %vm208, 1, 0
      %v241 = vsel %vm209, 1, 0
      %v242 = vsel %vm210, 1, 0
      %v243 = vsel %vm211, 1, 0
      %v244 = vsel %vm212, 1, 0
      %v245 = vsel %vm213, 1, 0
      %v246 = vsel %vm214, 1, 0
      %v247 = vsel %vm215, 1, 0
      %v248 = vsel %vm216, 1, 0
      %v249 = vsel %vm217, 1, 0
      %v250 = vsel %vm218, 1, 0
      %v251 = vsel %vm219, 1, 0
      %v252 = vsel %vm220, 1, 0
      %v253 = vsel %vm221, 1, 0
      %v254 = vsel %vm222, 1, 0
      %v255 = vsel %vm223, 1, 0
      %v256 = vsel %vm224, 1, 0
      %v257 = vsel %vm225, 1, 0
      %v258 = vsel %vm226, 1, 0
      %v259 = vsel %vm227, 1, 0
      %v260 = vcvt.s32.f32 %v228
      %v261 = vcvt.s32.f32 %v229
      %v262 = vcvt.s32.f32 %v230
      %v263 = vcvt.s32.f32 %v231
      %v264 = vcvt.s32.f32 %v232
      %v265 = vcvt.s32.f32 %v233
      %v266 = vcvt.s32.f32 %v234
      %v267 = vcvt.s32.f32 %v235
      %v268 = vcvt.s32.f32 %v236
      %v269 = vcvt.s32.f32 %v237
      %v270 = vcvt.s32.f32 %v238
      %v271 = vcvt.s32.f32 %v239
      %v272 = vcvt.s32.f32 %v240
      %v273 = vcvt.s32.f32 %v241
      %v274 = vcvt.s32.f32 %v242
      %v275 = vcvt.s32.f32 %v243
      %v276 = vcvt.s32.f32 %v244
      %v277 = vcvt.s32.f32 %v245
      %v278 = vcvt.s32.f32 %v246
      %v279 = vcvt.s32.f32 %v247
      %v280 = vcvt.s32.f32 %v248
      %v281 = vcvt.s32.f32 %v249
      %v282 = vcvt.s32.f32 %v250
      %v283 = vcvt.s32.f32 %v251
      %v284 = vcvt.s32.f32 %v252
      %v285 = vcvt.s32.f32 %v253
      %v286 = vcvt.s32.f32 %v254
      %v287 = vcvt.s32.f32 %v255
      %v288 = vcvt.s32.f32 %v256
      %v289 = vcvt.s32.f32 %v257
      %v290 = vcvt.s32.f32 %v258
      %v291 = vcvt.s32.f32 %v259
      %vm292 = vcmask 130048
      %293 = vst.msk [vmem:[#allocation2] sm:$0xff] %vm292, %v260
      %294 = vst.msk [vmem:[#allocation2 + $0x8] sm:$0xff] %vm292, %v261
      %295 = vst.msk [vmem:[#allocation2 + $0x10] sm:$0xff] %vm292, %v262
      %296 = vst.msk [vmem:[#allocation2 + $0x18] sm:$0xff] %vm292, %v263
      %297 = vst.msk [vmem:[#allocation2 + $0x20] sm:$0xff] %vm292, %v264
      %298 = vst.msk [vmem:[#allocation2 + $0x28] sm:$0xff] %vm292, %v265
      %299 = vst.msk [vmem:[#allocation2 + $0x30] sm:$0xff] %vm292, %v266
      %300 = vst.msk [vmem:[#allocation2 + $0x38] sm:$0xff] %vm292, %v267
      %301 = vst.msk [vmem:[#allocation2 + $0x40] sm:$0xff] %vm292, %v268
      %302 = vst.msk [vmem:[#allocation2 + $0x48] sm:$0xff] %vm292, %v269
      %303 = vst.msk [vmem:[#allocation2 + $0x50] sm:$0xff] %vm292, %v270
      %304 = vst.msk [vmem:[#allocation2 + $0x58] sm:$0xff] %vm292, %v271
      %305 = vst.msk [vmem:[#allocation2 + $0x60] sm:$0xff] %vm292, %v272
      %306 = vst.msk [vmem:[#allocation2 + $0x68] sm:$0xff] %vm292, %v273
      %307 = vst.msk [vmem:[#allocation2 + $0x70] sm:$0xff] %vm292, %v274
      %308 = vst.msk [vmem:[#allocation2 + $0x78] sm:$0xff] %vm292, %v275
      %309 = vst.msk [vmem:[#allocation2 + $0x80] sm:$0xff] %vm292, %v276
      %310 = vst.msk [vmem:[#allocation2 + $0x88] sm:$0xff] %vm292, %v277
      %311 = vst.msk [vmem:[#allocation2 + $0x90] sm:$0xff] %vm292, %v278
      %312 = vst.msk [vmem:[#allocation2 + $0x98] sm:$0xff] %vm292, %v279
      %313 = vst.msk [vmem:[#allocation2 + $0xa0] sm:$0xff] %vm292, %v280
      %314 = vst.msk [vmem:[#allocation2 + $0xa8] sm:$0xff] %vm292, %v281
      %315 = vst.msk [vmem:[#allocation2 + $0xb0] sm:$0xff] %vm292, %v282
      %316 = vst.msk [vmem:[#allocation2 + $0xb8] sm:$0xff] %vm292, %v283
      %317 = vst.msk [vmem:[#allocation2 + $0xc0] sm:$0xff] %vm292, %v284
      %318 = vst.msk [vmem:[#allocation2 + $0xc8] sm:$0xff] %vm292, %v285
      %319 = vst.msk [vmem:[#allocation2 + $0xd0] sm:$0xff] %vm292, %v286
      %320 = vst.msk [vmem:[#allocation2 + $0xd8] sm:$0xff] %vm292, %v287
      %321 = vst.msk [vmem:[#allocation2 + $0xe0] sm:$0xff] %vm292, %v288
      %322 = vst.msk [vmem:[#allocation2 + $0xe8] sm:$0xff] %vm292, %v289
      %323 = vst.msk [vmem:[#allocation2 + $0xf0] sm:$0xff] %vm292, %v290
      %324 = vst.msk [vmem:[#allocation2 + $0xf8] sm:$0xff] %vm292, %v291
      %vm325 = vcmp.eq.s32.totalorder %v33, 0
      %v326 = vsel %vm325, 0.0, -1e+30
      %327 = vst [vmem:[#allocation4] sm:$0x3] %v326
    $region25: #{tpu_custom_call.1} parent=1 // pred_fallthru
      _
    %v328 = vld [vmem:[#allocation5] sm:$0xff]
    %vm329 = vcmask 130048
    %v330 = vsel %vm329, %v328, -inf
    %331 = vmax.xlane.f32.xlu0 %v330
    %v332 = vpop.xlane.xlu0 %331
    %v333 = vsub.f32 %v328, %v332
    %v334 = vmul.f32 %v333, 1.442695
    %v335 = vpow.pop %v334
    %v336 = vsel %vm329, %v335, 0.0
    %337 = vadd.xlane.f32.xlu0 %v336
    %v338 = vpop.xlane.xlu0 %337
    %v339 = vlog2.pop %v338
    %v340 = vmul.f32 %v339, 0.6931472
    %v341 = vadd.f32 %v332, %v340
    %v342 = vsub.f32 %v328, %v341
    %v343 = vld [vmem:[#allocation2] sm:$0xff]
    %v344 = vld [vmem:[#allocation2 + $0x8] sm:$0xff]
    %v345 = vld [vmem:[#allocation2 + $0x10] sm:$0xff]
    %v346 = vld [vmem:[#allocation2 + $0x18] sm:$0xff]
    %v347 = vld [vmem:[#allocation2 + $0x20] sm:$0xff]
    %v348 = vld [vmem:[#allocation2 + $0x28] sm:$0xff]
    %v349 = vld [vmem:[#allocation2 + $0x30] sm:$0xff]
    %v350 = vld [vmem:[#allocation2 + $0x38] sm:$0xff]
    %v351 = vld [vmem:[#allocation2 + $0x40] sm:$0xff]
    %v352 = vld [vmem:[#allocation2 + $0x48] sm:$0xff]
    %v353 = vld [vmem:[#allocation2 + $0x50] sm:$0xff]
    %v354 = vld [vmem:[#allocation2 + $0x58] sm:$0xff]
    %v355 = vld [vmem:[#allocation2 + $0x60] sm:$0xff]
    %v356 = vld [vmem:[#allocation2 + $0x68] sm:$0xff]
    %v357 = vld [vmem:[#allocation2 + $0x70] sm:$0xff]
    %v358 = vld [vmem:[#allocation2 + $0x78] sm:$0xff]
    %v360 = vsel %vm329, %v342, 0
    %v363 = vsel %vm329, %v343, 0
    %v366 = vsel %vm329, %v344, 0
    %v369 = vsel %vm329, %v345, 0
    %v372 = vsel %vm329, %v346, 0
    %v375 = vsel %vm329, %v347, 0
    %v378 = vsel %vm329, %v348, 0
    %v381 = vsel %vm329, %v349, 0
    %v384 = vsel %vm329, %v350, 0
    %v387 = vsel %vm329, %v351, 0
    %v390 = vsel %vm329, %v352, 0
    %v393 = vsel %vm329, %v353, 0
    %v396 = vsel %vm329, %v354, 0
    %v399 = vsel %vm329, %v355, 0
    %v402 = vsel %vm329, %v356, 0
    %v405 = vsel %vm329, %v357, 0
    %v408 = vsel %vm329, %v358, 0
    %410 = vmatprep.subr.mxu0 0.0
    %v411 = vand.u32 %v408, 4294901760
    %412 = vmatpush1.xpose.msra.mxu0 %v411
    %413 = vmatprep.subr.mxu0 0.0
    %v414 = vand.u32 %v405, 4294901760
    %415 = vmatpush1.xpose.msra.mxu0 %v414
    %416 = vmatprep.subr.mxu0 0.0
    %v417 = vand.u32 %v402, 4294901760
    %418 = vmatpush1.xpose.msra.mxu0 %v417
    %419 = vmatprep.subr.mxu0 0.0
    %v420 = vand.u32 %v399, 4294901760
    %421 = vmatpush1.xpose.msra.mxu0 %v420
    %422 = vmatprep.subr.mxu0 0.0
    %v423 = vand.u32 %v396, 4294901760
    %424 = vmatpush1.xpose.msra.mxu0 %v423
    %425 = vmatprep.subr.mxu0 0.0
    %v426 = vand.u32 %v393, 4294901760
    %427 = vmatpush1.xpose.msra.mxu0 %v426
    %428 = vmatprep.subr.mxu0 0.0
    %v429 = vand.u32 %v390, 4294901760
    %430 = vmatpush1.xpose.msra.mxu0 %v429
    %431 = vmatprep.subr.mxu0 0.0
    %v432 = vand.u32 %v387, 4294901760
    %433 = vmatpush1.xpose.msra.mxu0 %v432
    %434 = vmatprep.subr.mxu0 0.0
    %v435 = vand.u32 %v384, 4294901760
    %436 = vmatpush1.xpose.msra.mxu0 %v435
    %437 = vmatprep.subr.mxu0 0.0
    %v438 = vand.u32 %v381, 4294901760
    %439 = vmatpush1.xpose.msra.mxu0 %v438
    %440 = vmatprep.subr.mxu0 0.0
    %v441 = vand.u32 %v378, 4294901760
    %442 = vmatpush1.xpose.msra.mxu0 %v441
    %443 = vmatprep.subr.mxu0 0.0
    %v444 = vand.u32 %v375, 4294901760
    %445 = vmatpush1.xpose.msra.mxu0 %v444
    %446 = vmatprep.subr.mxu0 0.0
    %v447 = vand.u32 %v372, 4294901760
    %448 = vmatpush1.xpose.msra.mxu0 %v447
    %449 = vmatprep.subr.mxu0 0.0
    %v450 = vand.u32 %v369, 4294901760
    %451 = vmatpush1.xpose.msra.mxu0 %v450
    %452 = vmatprep.subr.mxu0 0.0
    %v453 = vand.u32 %v366, 4294901760
    %454 = vmatpush1.xpose.msra.mxu0 %v453
    %455 = vmatprep.subr.mxu0 0.0
    %v456 = vand.u32 %v363, 4294901760
    %457 = vmatpush1.xpose.msra.mxu0 %v456
    %458 = vmatprep.subr.mxu0 0.0
    %459 = vmatpush2.xpose.msra.mxu0 0.0
    %460 = vmatprep.subr.mxu0 0.0
    %461 = vmatpush2.xpose.msra.mxu0 0.0
    %462 = vmatprep.subr.mxu0 0.0
    %463 = vmatpush2.xpose.msra.mxu0 0.0
    %464 = vmatprep.subr.mxu0 0.0
    %465 = vmatpush2.xpose.msra.mxu0 0.0
    %466 = vmatprep.subr.mxu0 0.0
    %467 = vmatpush2.xpose.msra.mxu0 0.0
    %468 = vmatprep.subr.mxu0 0.0
    %469 = vmatpush2.xpose.msra.mxu0 0.0
    %470 = vmatprep.subr.mxu0 0.0
    %471 = vmatpush2.xpose.msra.mxu0 0.0
    %472 = vmatprep.subr.mxu0 0.0
    %473 = vmatpush2.xpose.msra.mxu0 0.0
    %474 = vmatprep.subr.mxu0 0.0
    %475 = vmatpush2.xpose.msra.mxu0 0.0
    %476 = vmatprep.subr.mxu0 0.0
    %477 = vmatpush2.xpose.msra.mxu0 0.0
    %478 = vmatprep.subr.mxu0 0.0
    %479 = vmatpush2.xpose.msra.mxu0 0.0
    %480 = vmatprep.subr.mxu0 0.0
    %481 = vmatpush2.xpose.msra.mxu0 0.0
    %482 = vmatprep.subr.mxu0 0.0
    %483 = vmatpush2.xpose.msra.mxu0 0.0
    %484 = vmatprep.subr.mxu0 0.0
    %485 = vmatpush2.xpose.msra.mxu0 0.0
    %486 = vmatprep.subr.mxu0 0.0
    %487 = vmatpush2.xpose.msra.mxu0 0.0
    %488 = vmatprep.subr.mxu0 0.0
    %489 = vmatpush2.xpose.msra.mxu0 0.0
    %490 = vmatprep.mubr.f32.mxu0 0.0
    %v491 = vand.u32 %v360, 4294901760
    %v492 = vsub.f32 %v360, %v491
    %v493 = vand.u32 %v492, 4294901760
    %v494 = vsub.f32 %v492, %v493
    %v495 = vand.u32 %v494, 4294901760
    %496 = vmatmul.mubr.f32.gmra.mxu0 %v495
    %v497 = vpop.f32.mrf.mxu0
    %v498 = vadd.f32 0.0, %v497
    %v499 = vpop.f32.mrf.mxu0
    %500 = vdwg.mxu0
    %501 = vmatprep.subr.mxu0 0.0
    %v502 = vand.u32 %v408, 4294901760
    %v503 = vsub.f32 %v408, %v502
    %v504 = vand.u32 %v503, 4294901760
    %v505 = vsub.f32 %v503, %v504
    %v506 = vand.u32 %v505, 4294901760
    %507 = vmatpush1.xpose.msra.mxu0 %v506
    %508 = vmatprep.subr.mxu0 0.0
    %v509 = vand.u32 %v405, 4294901760
    %v510 = vsub.f32 %v405, %v509
    %v511 = vand.u32 %v510, 4294901760
    %v512 = vsub.f32 %v510, %v511
    %v513 = vand.u32 %v512, 4294901760
    %514 = vmatpush1.xpose.msra.mxu0 %v513
    %515 = vmatprep.subr.mxu0 0.0
    %v516 = vand.u32 %v402, 4294901760
    %v517 = vsub.f32 %v402, %v516
    %v518 = vand.u32 %v517, 4294901760
    %v519 = vsub.f32 %v517, %v518
    %v520 = vand.u32 %v519, 4294901760
    %521 = vmatpush1.xpose.msra.mxu0 %v520
    %522 = vmatprep.subr.mxu0 0.0
    %v523 = vand.u32 %v399, 4294901760
    %v524 = vsub.f32 %v399, %v523
    %v525 = vand.u32 %v524, 4294901760
    %v526 = vsub.f32 %v524, %v525
    %v527 = vand.u32 %v526, 4294901760
    %528 = vmatpush1.xpose.msra.mxu0 %v527
    %529 = vmatprep.subr.mxu0 0.0
    %v530 = vand.u32 %v396, 4294901760
    %v531 = vsub.f32 %v396, %v530
    %v532 = vand.u32 %v531, 4294901760
    %v533 = vsub.f32 %v531, %v532
    %v534 = vand.u32 %v533, 4294901760
    %535 = vmatpush1.xpose.msra.mxu0 %v534
    %536 = vmatprep.subr.mxu0 0.0
    %v537 = vand.u32 %v393, 4294901760
    %v538 = vsub.f32 %v393, %v537
    %v539 = vand.u32 %v538, 4294901760
    %v540 = vsub.f32 %v538, %v539
    %v541 = vand.u32 %v540, 4294901760
    %542 = vmatpush1.xpose.msra.mxu0 %v541
    %543 = vmatprep.subr.mxu0 0.0
    %v544 = vand.u32 %v390, 4294901760
    %v545 = vsub.f32 %v390, %v544
    %v546 = vand.u32 %v545, 4294901760
    %v547 = vsub.f32 %v545, %v546
    %v548 = vand.u32 %v547, 4294901760
    %549 = vmatpush1.xpose.msra.mxu0 %v548
    %550 = vmatprep.subr.mxu0 0.0
    %v551 = vand.u32 %v387, 4294901760
    %v552 = vsub.f32 %v387, %v551
    %v553 = vand.u32 %v552, 4294901760
    %v554 = vsub.f32 %v552, %v553
    %v555 = vand.u32 %v554, 4294901760
    %556 = vmatpush1.xpose.msra.mxu0 %v555
    %557 = vmatprep.subr.mxu0 0.0
    %v558 = vand.u32 %v384, 4294901760
    %v559 = vsub.f32 %v384, %v558
    %v560 = vand.u32 %v559, 4294901760
    %v561 = vsub.f32 %v559, %v560
    %v562 = vand.u32 %v561, 4294901760
    %563 = vmatpush1.xpose.msra.mxu0 %v562
    %564 = vmatprep.subr.mxu0 0.0
    %v565 = vand.u32 %v381, 4294901760
    %v566 = vsub.f32 %v381, %v565
    %v567 = vand.u32 %v566, 4294901760
    %v568 = vsub.f32 %v566, %v567
    %v569 = vand.u32 %v568, 4294901760
    %570 = vmatpush1.xpose.msra.mxu0 %v569
    %571 = vmatprep.subr.mxu0 0.0
    %v572 = vand.u32 %v378, 4294901760
    %v573 = vsub.f32 %v378, %v572
    %v574 = vand.u32 %v573, 4294901760
    %v575 = vsub.f32 %v573, %v574
    %v576 = vand.u32 %v575, 4294901760
    %577 = vmatpush1.xpose.msra.mxu0 %v576
    %578 = vmatprep.subr.mxu0 0.0
    %v579 = vand.u32 %v375, 4294901760
    %v580 = vsub.f32 %v375, %v579
    %v581 = vand.u32 %v580, 4294901760
    %v582 = vsub.f32 %v580, %v581
    %v583 = vand.u32 %v582, 4294901760
    %584 = vmatpush1.xpose.msra.mxu0 %v583
    %585 = vmatprep.subr.mxu0 0.0
    %v586 = vand.u32 %v372, 4294901760
    %v587 = vsub.f32 %v372, %v586
    %v588 = vand.u32 %v587, 4294901760
    %v589 = vsub.f32 %v587, %v588
    %v590 = vand.u32 %v589, 4294901760
    %591 = vmatpush1.xpose.msra.mxu0 %v590
    %592 = vmatprep.subr.mxu0 0.0
    %v593 = vand.u32 %v369, 4294901760
    %v594 = vsub.f32 %v369, %v593
    %v595 = vand.u32 %v594, 4294901760
    %v596 = vsub.f32 %v594, %v595
    %v597 = vand.u32 %v596, 4294901760
    %598 = vmatpush1.xpose.msra.mxu0 %v597
    %599 = vmatprep.subr.mxu0 0.0
    %v600 = vand.u32 %v366, 4294901760
    %v601 = vsub.f32 %v366, %v600
    %v602 = vand.u32 %v601, 4294901760
    %v603 = vsub.f32 %v601, %v602
    %v604 = vand.u32 %v603, 4294901760
    %605 = vmatpush1.xpose.msra.mxu0 %v604
    %606 = vmatprep.subr.mxu0 0.0
    %v607 = vand.u32 %v363, 4294901760
    %v608 = vsub.f32 %v363, %v607
    %v609 = vand.u32 %v608, 4294901760
    %v610 = vsub.f32 %v608, %v609
    %v611 = vand.u32 %v610, 4294901760
    %612 = vmatpush1.xpose.msra.mxu0 %v611
    %613 = vmatprep.subr.mxu0 0.0
    %614 = vmatpush2.xpose.msra.mxu0 0.0
    %615 = vmatprep.subr.mxu0 0.0
    %616 = vmatpush2.xpose.msra.mxu0 0.0
    %617 = vmatprep.subr.mxu0 0.0
    %618 = vmatpush2.xpose.msra.mxu0 0.0
    %619 = vmatprep.subr.mxu0 0.0
    %620 = vmatpush2.xpose.msra.mxu0 0.0
    %621 = vmatprep.subr.mxu0 0.0
    %622 = vmatpush2.xpose.msra.mxu0 0.0
    %623 = vmatprep.subr.mxu0 0.0
    %624 = vmatpush2.xpose.msra.mxu0 0.0
    %625 = vmatprep.subr.mxu0 0.0
    %626 = vmatpush2.xpose.msra.mxu0 0.0
    %627 = vmatprep.subr.mxu0 0.0
    %628 = vmatpush2.xpose.msra.mxu0 0.0
    %629 = vmatprep.subr.mxu0 0.0
    %630 = vmatpush2.xpose.msra.mxu0 0.0
    %631 = vmatprep.subr.mxu0 0.0
    %632 = vmatpush2.xpose.msra.mxu0 0.0
    %633 = vmatprep.subr.mxu0 0.0
    %634 = vmatpush2.xpose.msra.mxu0 0.0
    %635 = vmatprep.subr.mxu0 0.0
    %636 = vmatpush2.xpose.msra.mxu0 0.0
    %637 = vmatprep.subr.mxu0 0.0
    %638 = vmatpush2.xpose.msra.mxu0 0.0
    %639 = vmatprep.subr.mxu0 0.0
    %640 = vmatpush2.xpose.msra.mxu0 0.0
    %641 = vmatprep.subr.mxu0 0.0
    %642 = vmatpush2.xpose.msra.mxu0 0.0
    %643 = vmatprep.subr.mxu0 0.0
    %644 = vmatpush2.xpose.msra.mxu0 0.0
    %645 = vmatprep.mubr.f32.mxu0 0.0
    %v646 = vand.u32 %v360, 4294901760
    %647 = vmatmul.mubr.f32.gmra.mxu0 %v646
    %v648 = vpop.f32.mrf.mxu0
    %v649 = vadd.f32 %v498, %v648
    %v650 = vpop.f32.mrf.mxu0
    %651 = vdwg.mxu0
    %652 = vmatprep.subr.mxu0 0.0
    %v653 = vand.u32 %v408, 4294901760
    %v654 = vsub.f32 %v408, %v653
    %655 = vmatpush1.xpose.msra.mxu0 %v654
    %656 = vmatprep.subr.mxu0 0.0
    %v657 = vand.u32 %v405, 4294901760
    %v658 = vsub.f32 %v405, %v657
    %659 = vmatpush1.xpose.msra.mxu0 %v658
    %660 = vmatprep.subr.mxu0 0.0
    %v661 = vand.u32 %v402, 4294901760
    %v662 = vsub.f32 %v402, %v661
    %663 = vmatpush1.xpose.msra.mxu0 %v662
    %664 = vmatprep.subr.mxu0 0.0
    %v665 = vand.u32 %v399, 4294901760
    %v666 = vsub.f32 %v399, %v665
    %667 = vmatpush1.xpose.msra.mxu0 %v666
    %668 = vmatprep.subr.mxu0 0.0
    %v669 = vand.u32 %v396, 4294901760
    %v670 = vsub.f32 %v396, %v669
    %671 = vmatpush1.xpose.msra.mxu0 %v670
    %672 = vmatprep.subr.mxu0 0.0
    %v673 = vand.u32 %v393, 4294901760
    %v674 = vsub.f32 %v393, %v673
    %675 = vmatpush1.xpose.msra.mxu0 %v674
    %676 = vmatprep.subr.mxu0 0.0
    %v677 = vand.u32 %v390, 4294901760
    %v678 = vsub.f32 %v390, %v677
    %679 = vmatpush1.xpose.msra.mxu0 %v678
    %680 = vmatprep.subr.mxu0 0.0
    %v681 = vand.u32 %v387, 4294901760
    %v682 = vsub.f32 %v387, %v681
    %683 = vmatpush1.xpose.msra.mxu0 %v682
    %684 = vmatprep.subr.mxu0 0.0
    %v685 = vand.u32 %v384, 4294901760
    %v686 = vsub.f32 %v384, %v685
    %687 = vmatpush1.xpose.msra.mxu0 %v686
    %688 = vmatprep.subr.mxu0 0.0
    %v689 = vand.u32 %v381, 4294901760
    %v690 = vsub.f32 %v381, %v689
    %691 = vmatpush1.xpose.msra.mxu0 %v690
    %692 = vmatprep.subr.mxu0 0.0
    %v693 = vand.u32 %v378, 4294901760
    %v694 = vsub.f32 %v378, %v693
    %695 = vmatpush1.xpose.msra.mxu0 %v694
    %696 = vmatprep.subr.mxu0 0.0
    %v697 = vand.u32 %v375, 4294901760
    %v698 = vsub.f32 %v375, %v697
    %699 = vmatpush1.xpose.msra.mxu0 %v698
    %700 = vmatprep.subr.mxu0 0.0
    %v701 = vand.u32 %v372, 4294901760
    %v702 = vsub.f32 %v372, %v701
    %703 = vmatpush1.xpose.msra.mxu0 %v702
    %704 = vmatprep.subr.mxu0 0.0
    %v705 = vand.u32 %v369, 4294901760
    %v706 = vsub.f32 %v369, %v705
    %707 = vmatpush1.xpose.msra.mxu0 %v706
    %708 = vmatprep.subr.mxu0 0.0
    %v709 = vand.u32 %v366, 4294901760
    %v710 = vsub.f32 %v366, %v709
    %711 = vmatpush1.xpose.msra.mxu0 %v710
    %712 = vmatprep.subr.mxu0 0.0
    %v713 = vand.u32 %v363, 4294901760
    %v714 = vsub.f32 %v363, %v713
    %715 = vmatpush1.xpose.msra.mxu0 %v714
    %716 = vmatprep.subr.mxu0 0.0
    %717 = vmatpush2.xpose.msra.mxu0 0.0
    %718 = vmatprep.subr.mxu0 0.0
    %719 = vmatpush2.xpose.msra.mxu0 0.0
    %720 = vmatprep.subr.mxu0 0.0
    %721 = vmatpush2.xpose.msra.mxu0 0.0
    %722 = vmatprep.subr.mxu0 0.0
    %723 = vmatpush2.xpose.msra.mxu0 0.0
    %724 = vmatprep.subr.mxu0 0.0
    %725 = vmatpush2.xpose.msra.mxu0 0.0
    %726 = vmatprep.subr.mxu0 0.0
    %727 = vmatpush2.xpose.msra.mxu0 0.0
    %728 = vmatprep.subr.mxu0 0.0
    %729 = vmatpush2.xpose.msra.mxu0 0.0
    %730 = vmatprep.subr.mxu0 0.0
    %731 = vmatpush2.xpose.msra.mxu0 0.0
    %732 = vmatprep.subr.mxu0 0.0
    %733 = vmatpush2.xpose.msra.mxu0 0.0
    %734 = vmatprep.subr.mxu0 0.0
    %735 = vmatpush2.xpose.msra.mxu0 0.0
    %736 = vmatprep.subr.mxu0 0.0
    %737 = vmatpush2.xpose.msra.mxu0 0.0
    %738 = vmatprep.subr.mxu0 0.0
    %739 = vmatpush2.xpose.msra.mxu0 0.0
    %740 = vmatprep.subr.mxu0 0.0
    %741 = vmatpush2.xpose.msra.mxu0 0.0
    %742 = vmatprep.subr.mxu0 0.0
    %743 = vmatpush2.xpose.msra.mxu0 0.0
    %744 = vmatprep.subr.mxu0 0.0
    %745 = vmatpush2.xpose.msra.mxu0 0.0
    %746 = vmatprep.subr.mxu0 0.0
    %747 = vmatpush2.xpose.msra.mxu0 0.0
    %748 = vmatprep.mubr.f32.mxu0 0.0
    %v749 = vand.u32 %v360, 4294901760
    %v750 = vsub.f32 %v360, %v749
    %751 = vmatmul.mubr.f32.gmra.mxu0 %v750
    %v752 = vpop.f32.mrf.mxu0
    %v753 = vadd.f32 %v649, %v752
    %v754 = vpop.f32.mrf.mxu0
    %755 = vdwg.mxu0
    %756 = vmatprep.subr.mxu0 0.0
    %v757 = vand.u32 %v408, 4294901760
    %758 = vmatpush1.xpose.msra.mxu0 %v757
    %759 = vmatprep.subr.mxu0 0.0
    %v760 = vand.u32 %v405, 4294901760
    %761 = vmatpush1.xpose.msra.mxu0 %v760
    %762 = vmatprep.subr.mxu0 0.0
    %v763 = vand.u32 %v402, 4294901760
    %764 = vmatpush1.xpose.msra.mxu0 %v763
    %765 = vmatprep.subr.mxu0 0.0
    %v766 = vand.u32 %v399, 4294901760
    %767 = vmatpush1.xpose.msra.mxu0 %v766
    %768 = vmatprep.subr.mxu0 0.0
    %v769 = vand.u32 %v396, 4294901760
    %770 = vmatpush1.xpose.msra.mxu0 %v769
    %771 = vmatprep.subr.mxu0 0.0
    %v772 = vand.u32 %v393, 4294901760
    %773 = vmatpush1.xpose.msra.mxu0 %v772
    %774 = vmatprep.subr.mxu0 0.0
    %v775 = vand.u32 %v390, 4294901760
    %776 = vmatpush1.xpose.msra.mxu0 %v775
    %777 = vmatprep.subr.mxu0 0.0
    %v778 = vand.u32 %v387, 4294901760
    %779 = vmatpush1.xpose.msra.mxu0 %v778
    %780 = vmatprep.subr.mxu0 0.0
    %v781 = vand.u32 %v384, 4294901760
    %782 = vmatpush1.xpose.msra.mxu0 %v781
    %783 = vmatprep.subr.mxu0 0.0
    %v784 = vand.u32 %v381, 4294901760
    %785 = vmatpush1.xpose.msra.mxu0 %v784
    %786 = vmatprep.subr.mxu0 0.0
    %v787 = vand.u32 %v378, 4294901760
    %788 = vmatpush1.xpose.msra.mxu0 %v787
    %789 = vmatprep.subr.mxu0 0.0
    %v790 = vand.u32 %v375, 4294901760
    %791 = vmatpush1.xpose.msra.mxu0 %v790
    %792 = vmatprep.subr.mxu0 0.0
    %v793 = vand.u32 %v372, 4294901760
    %794 = vmatpush1.xpose.msra.mxu0 %v793
    %795 = vmatprep.subr.mxu0 0.0
    %v796 = vand.u32 %v369, 4294901760
    %797 = vmatpush1.xpose.msra.mxu0 %v796
    %798 = vmatprep.subr.mxu0 0.0
    %v799 = vand.u32 %v366, 4294901760
    %800 = vmatpush1.xpose.msra.mxu0 %v799
    %801 = vmatprep.subr.mxu0 0.0
    %v802 = vand.u32 %v363, 4294901760
    %803 = vmatpush1.xpose.msra.mxu0 %v802
    %804 = vmatprep.subr.mxu0 0.0
    %805 = vmatpush2.xpose.msra.mxu0 0.0
    %806 = vmatprep.subr.mxu0 0.0
    %807 = vmatpush2.xpose.msra.mxu0 0.0
    %808 = vmatprep.subr.mxu0 0.0
    %809 = vmatpush2.xpose.msra.mxu0 0.0
    %810 = vmatprep.subr.mxu0 0.0
    %811 = vmatpush2.xpose.msra.mxu0 0.0
    %812 = vmatprep.subr.mxu0 0.0
    %813 = vmatpush2.xpose.msra.mxu0 0.0
    %814 = vmatprep.subr.mxu0 0.0
    %815 = vmatpush2.xpose.msra.mxu0 0.0
    %816 = vmatprep.subr.mxu0 0.0
    %817 = vmatpush2.xpose.msra.mxu0 0.0
    %818 = vmatprep.subr.mxu0 0.0
    %819 = vmatpush2.xpose.msra.mxu0 0.0
    %820 = vmatprep.subr.mxu0 0.0
    %821 = vmatpush2.xpose.msra.mxu0 0.0
    %822 = vmatprep.subr.mxu0 0.0
    %823 = vmatpush2.xpose.msra.mxu0 0.0
    %824 = vmatprep.subr.mxu0 0.0
    %825 = vmatpush2.xpose.msra.mxu0 0.0
    %826 = vmatprep.subr.mxu0 0.0
    %827 = vmatpush2.xpose.msra.mxu0 0.0
    %828 = vmatprep.subr.mxu0 0.0
    %829 = vmatpush2.xpose.msra.mxu0 0.0
    %830 = vmatprep.subr.mxu0 0.0
    %831 = vmatpush2.xpose.msra.mxu0 0.0
    %832 = vmatprep.subr.mxu0 0.0
    %833 = vmatpush2.xpose.msra.mxu0 0.0
    %834 = vmatprep.subr.mxu0 0.0
    %835 = vmatpush2.xpose.msra.mxu0 0.0
    %836 = vmatprep.mubr.f32.mxu0 0.0
    %v837 = vand.u32 %v360, 4294901760
    %v838 = vsub.f32 %v360, %v837
    %v839 = vand.u32 %v838, 4294901760
    %840 = vmatmul.mubr.f32.gmra.mxu0 %v839
    %v841 = vpop.f32.mrf.mxu0
    %v842 = vadd.f32 %v753, %v841
    %v843 = vpop.f32.mrf.mxu0
    %844 = vdwg.mxu0
    %845 = vmatprep.subr.mxu0 0.0
    %v846 = vand.u32 %v408, 4294901760
    %v847 = vsub.f32 %v408, %v846
    %v848 = vand.u32 %v847, 4294901760
    %849 = vmatpush1.xpose.msra.mxu0 %v848
    %850 = vmatprep.subr.mxu0 0.0
    %v851 = vand.u32 %v405, 4294901760
    %v852 = vsub.f32 %v405, %v851
    %v853 = vand.u32 %v852, 4294901760
    %854 = vmatpush1.xpose.msra.mxu0 %v853
    %855 = vmatprep.subr.mxu0 0.0
    %v856 = vand.u32 %v402, 4294901760
    %v857 = vsub.f32 %v402, %v856
    %v858 = vand.u32 %v857, 4294901760
    %859 = vmatpush1.xpose.msra.mxu0 %v858
    %860 = vmatprep.subr.mxu0 0.0
    %v861 = vand.u32 %v399, 4294901760
    %v862 = vsub.f32 %v399, %v861
    %v863 = vand.u32 %v862, 4294901760
    %864 = vmatpush1.xpose.msra.mxu0 %v863
    %865 = vmatprep.subr.mxu0 0.0
    %v866 = vand.u32 %v396, 4294901760
    %v867 = vsub.f32 %v396, %v866
    %v868 = vand.u32 %v867, 4294901760
    %869 = vmatpush1.xpose.msra.mxu0 %v868
    %870 = vmatprep.subr.mxu0 0.0
    %v871 = vand.u32 %v393, 4294901760
    %v872 = vsub.f32 %v393, %v871
    %v873 = vand.u32 %v872, 4294901760
    %874 = vmatpush1.xpose.msra.mxu0 %v873
    %875 = vmatprep.subr.mxu0 0.0
    %v876 = vand.u32 %v390, 4294901760
    %v877 = vsub.f32 %v390, %v876
    %v878 = vand.u32 %v877, 4294901760
    %879 = vmatpush1.xpose.msra.mxu0 %v878
    %880 = vmatprep.subr.mxu0 0.0
    %v881 = vand.u32 %v387, 4294901760
    %v882 = vsub.f32 %v387, %v881
    %v883 = vand.u32 %v882, 4294901760
    %884 = vmatpush1.xpose.msra.mxu0 %v883
    %885 = vmatprep.subr.mxu0 0.0
    %v886 = vand.u32 %v384, 4294901760
    %v887 = vsub.f32 %v384, %v886
    %v888 = vand.u32 %v887, 4294901760
    %889 = vmatpush1.xpose.msra.mxu0 %v888
    %890 = vmatprep.subr.mxu0 0.0
    %v891 = vand.u32 %v381, 4294901760
    %v892 = vsub.f32 %v381, %v891
    %v893 = vand.u32 %v892, 4294901760
    %894 = vmatpush1.xpose.msra.mxu0 %v893
    %895 = vmatprep.subr.mxu0 0.0
    %v896 = vand.u32 %v378, 4294901760
    %v897 = vsub.f32 %v378, %v896
    %v898 = vand.u32 %v897, 4294901760
    %899 = vmatpush1.xpose.msra.mxu0 %v898
    %900 = vmatprep.subr.mxu0 0.0
    %v901 = vand.u32 %v375, 4294901760
    %v902 = vsub.f32 %v375, %v901
    %v903 = vand.u32 %v902, 4294901760
    %904 = vmatpush1.xpose.msra.mxu0 %v903
    %905 = vmatprep.subr.mxu0 0.0
    %v906 = vand.u32 %v372, 4294901760
    %v907 = vsub.f32 %v372, %v906
    %v908 = vand.u32 %v907, 4294901760
    %909 = vmatpush1.xpose.msra.mxu0 %v908
    %910 = vmatprep.subr.mxu0 0.0
    %v911 = vand.u32 %v369, 4294901760
    %v912 = vsub.f32 %v369, %v911
    %v913 = vand.u32 %v912, 4294901760
    %914 = vmatpush1.xpose.msra.mxu0 %v913
    %915 = vmatprep.subr.mxu0 0.0
    %v916 = vand.u32 %v366, 4294901760
    %v917 = vsub.f32 %v366, %v916
    %v918 = vand.u32 %v917, 4294901760
    %919 = vmatpush1.xpose.msra.mxu0 %v918
    %920 = vmatprep.subr.mxu0 0.0
    %v921 = vand.u32 %v363, 4294901760
    %v922 = vsub.f32 %v363, %v921
    %v923 = vand.u32 %v922, 4294901760
    %924 = vmatpush1.xpose.msra.mxu0 %v923
    %925 = vmatprep.subr.mxu0 0.0
    %926 = vmatpush2.xpose.msra.mxu0 0.0
    %927 = vmatprep.subr.mxu0 0.0
    %928 = vmatpush2.xpose.msra.mxu0 0.0
    %929 = vmatprep.subr.mxu0 0.0
    %930 = vmatpush2.xpose.msra.mxu0 0.0
    %931 = vmatprep.subr.mxu0 0.0
    %932 = vmatpush2.xpose.msra.mxu0 0.0
    %933 = vmatprep.subr.mxu0 0.0
    %934 = vmatpush2.xpose.msra.mxu0 0.0
    %935 = vmatprep.subr.mxu0 0.0
    %936 = vmatpush2.xpose.msra.mxu0 0.0
    %937 = vmatprep.subr.mxu0 0.0
    %938 = vmatpush2.xpose.msra.mxu0 0.0
    %939 = vmatprep.subr.mxu0 0.0
    %940 = vmatpush2.xpose.msra.mxu0 0.0
    %941 = vmatprep.subr.mxu0 0.0
    %942 = vmatpush2.xpose.msra.mxu0 0.0
    %943 = vmatprep.subr.mxu0 0.0
    %944 = vmatpush2.xpose.msra.mxu0 0.0
    %945 = vmatprep.subr.mxu0 0.0
    %946 = vmatpush2.xpose.msra.mxu0 0.0
    %947 = vmatprep.subr.mxu0 0.0
    %948 = vmatpush2.xpose.msra.mxu0 0.0
    %949 = vmatprep.subr.mxu0 0.0
    %950 = vmatpush2.xpose.msra.mxu0 0.0
    %951 = vmatprep.subr.mxu0 0.0
    %952 = vmatpush2.xpose.msra.mxu0 0.0
    %953 = vmatprep.subr.mxu0 0.0
    %954 = vmatpush2.xpose.msra.mxu0 0.0
    %955 = vmatprep.subr.mxu0 0.0
    %956 = vmatpush2.xpose.msra.mxu0 0.0
    %957 = vmatprep.mubr.f32.mxu0 0.0
    %v958 = vand.u32 %v360, 4294901760
    %959 = vmatmul.mubr.f32.gmra.mxu0 %v958
    %v960 = vpop.f32.mrf.mxu0
    %v961 = vadd.f32 %v842, %v960
    %v962 = vpop.f32.mrf.mxu0
    %963 = vdwg.mxu0
    %964 = vmatprep.subr.mxu0 0.0
    %v965 = vand.u32 %v408, 4294901760
    %966 = vmatpush1.xpose.msra.mxu0 %v965
    %967 = vmatprep.subr.mxu0 0.0
    %v968 = vand.u32 %v405, 4294901760
    %969 = vmatpush1.xpose.msra.mxu0 %v968
    %970 = vmatprep.subr.mxu0 0.0
    %v971 = vand.u32 %v402, 4294901760
    %972 = vmatpush1.xpose.msra.mxu0 %v971
    %973 = vmatprep.subr.mxu0 0.0
    %v974 = vand.u32 %v399, 4294901760
    %975 = vmatpush1.xpose.msra.mxu0 %v974
    %976 = vmatprep.subr.mxu0 0.0
    %v977 = vand.u32 %v396, 4294901760
    %978 = vmatpush1.xpose.msra.mxu0 %v977
    %979 = vmatprep.subr.mxu0 0.0
    %v980 = vand.u32 %v393, 4294901760
    %981 = vmatpush1.xpose.msra.mxu0 %v980
    %982 = vmatprep.subr.mxu0 0.0
    %v983 = vand.u32 %v390, 4294901760
    %984 = vmatpush1.xpose.msra.mxu0 %v983
    %985 = vmatprep.subr.mxu0 0.0
    %v986 = vand.u32 %v387, 4294901760
    %987 = vmatpush1.xpose.msra.mxu0 %v986
    %988 = vmatprep.subr.mxu0 0.0
    %v989 = vand.u32 %v384, 4294901760
    %990 = vmatpush1.xpose.msra.mxu0 %v989
    %991 = vmatprep.subr.mxu0 0.0
    %v992 = vand.u32 %v381, 4294901760
    %993 = vmatpush1.xpose.msra.mxu0 %v992
    %994 = vmatprep.subr.mxu0 0.0
    %v995 = vand.u32 %v378, 4294901760
    %996 = vmatpush1.xpose.msra.mxu0 %v995
    %997 = vmatprep.subr.mxu0 0.0
    %v998 = vand.u32 %v375, 4294901760
    %999 = vmatpush1.xpose.msra.mxu0 %v998
    %1000 = vmatprep.subr.mxu0 0.0
    %v1001 = vand.u32 %v372, 4294901760
    %1002 = vmatpush1.xpose.msra.mxu0 %v1001
    %1003 = vmatprep.subr.mxu0 0.0
    %v1004 = vand.u32 %v369, 4294901760
    %1005 = vmatpush1.xpose.msra.mxu0 %v1004
    %1006 = vmatprep.subr.mxu0 0.0
    %v1007 = vand.u32 %v366, 4294901760
    %1008 = vmatpush1.xpose.msra.mxu0 %v1007
    %1009 = vmatprep.subr.mxu0 0.0
    %v1010 = vand.u32 %v363, 4294901760
    %1011 = vmatpush1.xpose.msra.mxu0 %v1010
    %1012 = vmatprep.subr.mxu0 0.0
    %1013 = vmatpush2.xpose.msra.mxu0 0.0
    %1014 = vmatprep.subr.mxu0 0.0
    %1015 = vmatpush2.xpose.msra.mxu0 0.0
    %1016 = vmatprep.subr.mxu0 0.0
    %1017 = vmatpush2.xpose.msra.mxu0 0.0
    %1018 = vmatprep.subr.mxu0 0.0
    %1019 = vmatpush2.xpose.msra.mxu0 0.0
    %1020 = vmatprep.subr.mxu0 0.0
    %1021 = vmatpush2.xpose.msra.mxu0 0.0
    %1022 = vmatprep.subr.mxu0 0.0
    %1023 = vmatpush2.xpose.msra.mxu0 0.0
    %1024 = vmatprep.subr.mxu0 0.0
    %1025 = vmatpush2.xpose.msra.mxu0 0.0
    %1026 = vmatprep.subr.mxu0 0.0
    %1027 = vmatpush2.xpose.msra.mxu0 0.0
    %1028 = vmatprep.subr.mxu0 0.0
    %1029 = vmatpush2.xpose.msra.mxu0 0.0
    %1030 = vmatprep.subr.mxu0 0.0
    %1031 = vmatpush2.xpose.msra.mxu0 0.0
    %1032 = vmatprep.subr.mxu0 0.0
    %1033 = vmatpush2.xpose.msra.mxu0 0.0
    %1034 = vmatprep.subr.mxu0 0.0
    %1035 = vmatpush2.xpose.msra.mxu0 0.0
    %1036 = vmatprep.subr.mxu0 0.0
    %1037 = vmatpush2.xpose.msra.mxu0 0.0
    %1038 = vmatprep.subr.mxu0 0.0
    %1039 = vmatpush2.xpose.msra.mxu0 0.0
    %1040 = vmatprep.subr.mxu0 0.0
    %1041 = vmatpush2.xpose.msra.mxu0 0.0
    %1042 = vmatprep.subr.mxu0 0.0
    %1043 = vmatpush2.xpose.msra.mxu0 0.0
    %1044 = vmatprep.mubr.f32.mxu0 0.0
    %v1045 = vand.u32 %v360, 4294901760
    %1046 = vmatmul.mubr.f32.gmra.mxu0 %v1045
    %v1047 = vpop.f32.mrf.mxu0
    %v1048 = vadd.f32 %v961, %v1047
    %v1049 = vpop.f32.mrf.mxu0
    %1050 = vdwg.mxu0
    %v1052 = vcombine.high %v1048, %v1048
    %v1054 = vunpack.c.l.s4 1966171168
    %v1055 = vunpack.c.0.s8 %v1054
    %v1056 = vlaneseq
    %v1057 = vshrl.u32 %v1056, 7
    %v1058 = vsub.s32 %v1055, %v1057
    %v1059 = vrot.slane %v1048, %v1058
    %v1061 = vunpack.c.l.s4 1966171168
    %v1062 = vunpack.c.0.s8 %v1061
    %v1063 = vlaneseq
    %v1064 = vshrl.u32 %v1063, 7
    %v1065 = vsub.s32 %v1062, %v1064
    %v1066 = vrot.slane %v1052, %v1065
    %v1067 = vcombine.high %v1059, %v1059
    %v1068 = vcombine.high %v1066, %v1066
    %v1070 = vunpack.c.l.s4 1966171168
    %v1071 = vunpack.c.0.s8 %v1070
    %v1072 = vlaneseq
    %v1073 = vshrl.u32 %v1072, 7
    %v1074 = vsub.s32 %v1071, %v1073
    %v1075 = vrot.slane %v1059, %v1074
    %v1077 = vunpack.c.l.s4 1966171168
    %v1078 = vunpack.c.0.s8 %v1077
    %v1079 = vlaneseq
    %v1080 = vshrl.u32 %v1079, 7
    %v1081 = vsub.s32 %v1078, %v1080
    %v1082 = vrot.slane %v1066, %v1081
    %v1084 = vunpack.c.l.s4 1966171168
    %v1085 = vunpack.c.0.s8 %v1084
    %v1086 = vlaneseq
    %v1087 = vshrl.u32 %v1086, 7
    %v1088 = vsub.s32 %v1085, %v1087
    %v1089 = vrot.slane %v1067, %v1088
    %v1091 = vunpack.c.l.s4 1966171168
    %v1092 = vunpack.c.0.s8 %v1091
    %v1093 = vlaneseq
    %v1094 = vshrl.u32 %v1093, 7
    %v1095 = vsub.s32 %v1092, %v1094
    %v1096 = vrot.slane %v1068, %v1095
    %v1097 = vcombine.high %v1075, %v1075
    %v1098 = vcombine.high %v1082, %v1082
    %v1099 = vcombine.high %v1089, %v1089
    %v1100 = vcombine.high %v1096, %v1096
    %1109 = vst [vmem:[#allocation3] sm:$0x1] %v1075
    %1110 = vst [vmem:[#allocation3 + $0x2] sm:$0x1] %v1089
    %1111 = vst [vmem:[#allocation3 + $0x4] sm:$0x1] %v1097
    %1112 = vst [vmem:[#allocation3 + $0x6] sm:$0x1] %v1099
    %1113 = vst [vmem:[#allocation3 + $0x8] sm:$0x1] %v1082
    %1114 = vst [vmem:[#allocation3 + $0xa] sm:$0x1] %v1096
    %1115 = vst [vmem:[#allocation3 + $0xc] sm:$0x1] %v1098
    %1116 = vst [vmem:[#allocation3 + $0xe] sm:$0x1] %v1100
    %s1117 = scalar_lea.vmem [#allocation5], 8
    %v1118 = vld [vmem:[%s1117] sm:$0xff]
    %v1119 = vsel %vm329, %v1118, -inf
    %1120 = vmax.xlane.f32.xlu0 %v1119
    %v1121 = vpop.xlane.xlu0 %1120
    %v1122 = vsub.f32 %v1118, %v1121
    %v1123 = vmul.f32 %v1122, 1.442695
    %v1124 = vpow.pop %v1123
    %v1125 = vsel %vm329, %v1124, 0.0
    %1126 = vadd.xlane.f32.xlu0 %v1125
    %v1127 = vpop.xlane.xlu0 %1126
    %v1128 = vlog2.pop %v1127
    %v1129 = vmul.f32 %v1128, 0.6931472
    %v1130 = vadd.f32 %v1121, %v1129
    %v1131 = vsub.f32 %v1118, %v1130
    %s1132 = scalar_lea.vmem [#allocation2], 128
    %v1133 = vld [vmem:[%s1132] sm:$0xff]
    %v1134 = vld [vmem:[%s1132 + $0x8] sm:$0xff]
    %v1135 = vld [vmem:[%s1132 + $0x10] sm:$0xff]
    %v1136 = vld [vmem:[%s1132 + $0x18] sm:$0xff]
    %v1137 = vld [vmem:[%s1132 + $0x20] sm:$0xff]
    %v1138 = vld [vmem:[%s1132 + $0x28] sm:$0xff]
    %v1139 = vld [vmem:[%s1132 + $0x30] sm:$0xff]
    %v1140 = vld [vmem:[%s1132 + $0x38] sm:$0xff]
    %v1141 = vld [vmem:[%s1132 + $0x40] sm:$0xff]
    %v1142 = vld [vmem:[%s1132 + $0x48] sm:$0xff]
    %v1143 = vld [vmem:[%s1132 + $0x50] sm:$0xff]
    %v1144 = vld [vmem:[%s1132 + $0x58] sm:$0xff]
    %v1145 = vld [vmem:[%s1132 + $0x60] sm:$0xff]
    %v1146 = vld [vmem:[%s1132 + $0x68] sm:$0xff]
    %v1147 = vld [vmem:[%s1132 + $0x70] sm:$0xff]
    %v1148 = vld [vmem:[%s1132 + $0x78] sm:$0xff]
    %v1150 = vsel %vm329, %v1131, 0
    %v1153 = vsel %vm329, %v1133, 0
    %v1156 = vsel %vm329, %v1134, 0
    %v1159 = vsel %vm329, %v1135, 0
    %v1162 = vsel %vm329, %v1136, 0
    %v1165 = vsel %vm329, %v1137, 0
    %v1168 = vsel %vm329, %v1138, 0
    %v1171 = vsel %vm329, %v1139, 0
    %v1174 = vsel %vm329, %v1140, 0
    %v1177 = vsel %vm329, %v1141, 0
    %v1180 = vsel %vm329, %v1142, 0
    %v1183 = vsel %vm329, %v1143, 0
    %v1186 = vsel %vm329, %v1144, 0
    %v1189 = vsel %vm329, %v1145, 0
    %v1192 = vsel %vm329, %v1146, 0
    %v1195 = vsel %vm329, %v1147, 0
    %v1198 = vsel %vm329, %v1148, 0
    %1200 = vmatprep.subr.mxu0 0.0
    %v1201 = vand.u32 %v1198, 4294901760
    %1202 = vmatpush1.xpose.msra.mxu0 %v1201
    %1203 = vmatprep.subr.mxu0 0.0
    %v1204 = vand.u32 %v1195, 4294901760
    %1205 = vmatpush1.xpose.msra.mxu0 %v1204
    %1206 = vmatprep.subr.mxu0 0.0
    %v1207 = vand.u32 %v1192, 4294901760
    %1208 = vmatpush1.xpose.msra.mxu0 %v1207
    %1209 = vmatprep.subr.mxu0 0.0
    %v1210 = vand.u32 %v1189, 4294901760
    %1211 = vmatpush1.xpose.msra.mxu0 %v1210
    %1212 = vmatprep.subr.mxu0 0.0
    %v1213 = vand.u32 %v1186, 4294901760
    %1214 = vmatpush1.xpose.msra.mxu0 %v1213
    %1215 = vmatprep.subr.mxu0 0.0
    %v1216 = vand.u32 %v1183, 4294901760
    %1217 = vmatpush1.xpose.msra.mxu0 %v1216
    %1218 = vmatprep.subr.mxu0 0.0
    %v1219 = vand.u32 %v1180, 4294901760
    %1220 = vmatpush1.xpose.msra.mxu0 %v1219
    %1221 = vmatprep.subr.mxu0 0.0
    %v1222 = vand.u32 %v1177, 4294901760
    %1223 = vmatpush1.xpose.msra.mxu0 %v1222
    %1224 = vmatprep.subr.mxu0 0.0
    %v1225 = vand.u32 %v1174, 4294901760
    %1226 = vmatpush1.xpose.msra.mxu0 %v1225
    %1227 = vmatprep.subr.mxu0 0.0
    %v1228 = vand.u32 %v1171, 4294901760
    %1229 = vmatpush1.xpose.msra.mxu0 %v1228
    %1230 = vmatprep.subr.mxu0 0.0
    %v1231 = vand.u32 %v1168, 4294901760
    %1232 = vmatpush1.xpose.msra.mxu0 %v1231
    %1233 = vmatprep.subr.mxu0 0.0
    %v1234 = vand.u32 %v1165, 4294901760
    %1235 = vmatpush1.xpose.msra.mxu0 %v1234
    %1236 = vmatprep.subr.mxu0 0.0
    %v1237 = vand.u32 %v1162, 4294901760
    %1238 = vmatpush1.xpose.msra.mxu0 %v1237
    %1239 = vmatprep.subr.mxu0 0.0
    %v1240 = vand.u32 %v1159, 4294901760
    %1241 = vmatpush1.xpose.msra.mxu0 %v1240
    %1242 = vmatprep.subr.mxu0 0.0
    %v1243 = vand.u32 %v1156, 4294901760
    %1244 = vmatpush1.xpose.msra.mxu0 %v1243
    %1245 = vmatprep.subr.mxu0 0.0
    %v1246 = vand.u32 %v1153, 4294901760
    %1247 = vmatpush1.xpose.msra.mxu0 %v1246
    %1248 = vmatprep.subr.mxu0 0.0
    %1249 = vmatpush2.xpose.msra.mxu0 0.0
    %1250 = vmatprep.subr.mxu0 0.0
    %1251 = vmatpush2.xpose.msra.mxu0 0.0
    %1252 = vmatprep.subr.mxu0 0.0
    %1253 = vmatpush2.xpose.msra.mxu0 0.0
    %1254 = vmatprep.subr.mxu0 0.0
    %1255 = vmatpush2.xpose.msra.mxu0 0.0
    %1256 = vmatprep.subr.mxu0 0.0
    %1257 = vmatpush2.xpose.msra.mxu0 0.0
    %1258 = vmatprep.subr.mxu0 0.0
    %1259 = vmatpush2.xpose.msra.mxu0 0.0
    %1260 = vmatprep.subr.mxu0 0.0
    %1261 = vmatpush2.xpose.msra.mxu0 0.0
    %1262 = vmatprep.subr.mxu0 0.0
    %1263 = vmatpush2.xpose.msra.mxu0 0.0
    %1264 = vmatprep.subr.mxu0 0.0
    %1265 = vmatpush2.xpose.msra.mxu0 0.0
    %1266 = vmatprep.subr.mxu0 0.0
    %1267 = vmatpush2.xpose.msra.mxu0 0.0
    %1268 = vmatprep.subr.mxu0 0.0
    %1269 = vmatpush2.xpose.msra.mxu0 0.0
    %1270 = vmatprep.subr.mxu0 0.0
    %1271 = vmatpush2.xpose.msra.mxu0 0.0
    %1272 = vmatprep.subr.mxu0 0.0
    %1273 = vmatpush2.xpose.msra.mxu0 0.0
    %1274 = vmatprep.subr.mxu0 0.0
    %1275 = vmatpush2.xpose.msra.mxu0 0.0
    %1276 = vmatprep.subr.mxu0 0.0
    %1277 = vmatpush2.xpose.msra.mxu0 0.0
    %1278 = vmatprep.subr.mxu0 0.0
    %1279 = vmatpush2.xpose.msra.mxu0 0.0
    %1280 = vmatprep.mubr.f32.mxu0 0.0
    %v1281 = vand.u32 %v1150, 4294901760
    %v1282 = vsub.f32 %v1150, %v1281
    %v1283 = vand.u32 %v1282, 4294901760
    %v1284 = vsub.f32 %v1282, %v1283
    %v1285 = vand.u32 %v1284, 4294901760
    %1286 = vmatmul.mubr.f32.gmra.mxu0 %v1285
    %v1287 = vpop.f32.mrf.mxu0
    %v1288 = vadd.f32 0.0, %v1287
    %v1289 = vpop.f32.mrf.mxu0
    %1290 = vdwg.mxu0
    %1291 = vmatprep.subr.mxu0 0.0
    %v1292 = vand.u32 %v1198, 4294901760
    %v1293 = vsub.f32 %v1198, %v1292
    %v1294 = vand.u32 %v1293, 4294901760
    %v1295 = vsub.f32 %v1293, %v1294
    %v1296 = vand.u32 %v1295, 4294901760
    %1297 = vmatpush1.xpose.msra.mxu0 %v1296
    %1298 = vmatprep.subr.mxu0 0.0
    %v1299 = vand.u32 %v1195, 4294901760
    %v1300 = vsub.f32 %v1195, %v1299
    %v1301 = vand.u32 %v1300, 4294901760
    %v1302 = vsub.f32 %v1300, %v1301
    %v1303 = vand.u32 %v1302, 4294901760
    %1304 = vmatpush1.xpose.msra.mxu0 %v1303
    %1305 = vmatprep.subr.mxu0 0.0
    %v1306 = vand.u32 %v1192, 4294901760
    %v1307 = vsub.f32 %v1192, %v1306
    %v1308 = vand.u32 %v1307, 4294901760
    %v1309 = vsub.f32 %v1307, %v1308
    %v1310 = vand.u32 %v1309, 4294901760
    %1311 = vmatpush1.xpose.msra.mxu0 %v1310
    %1312 = vmatprep.subr.mxu0 0.0
    %v1313 = vand.u32 %v1189, 4294901760
    %v1314 = vsub.f32 %v1189, %v1313
    %v1315 = vand.u32 %v1314, 4294901760
    %v1316 = vsub.f32 %v1314, %v1315
    %v1317 = vand.u32 %v1316, 4294901760
    %1318 = vmatpush1.xpose.msra.mxu0 %v1317
    %1319 = vmatprep.subr.mxu0 0.0
    %v1320 = vand.u32 %v1186, 4294901760
    %v1321 = vsub.f32 %v1186, %v1320
    %v1322 = vand.u32 %v1321, 4294901760
    %v1323 = vsub.f32 %v1321, %v1322
    %v1324 = vand.u32 %v1323, 4294901760
    %1325 = vmatpush1.xpose.msra.mxu0 %v1324
    %1326 = vmatprep.subr.mxu0 0.0
    %v1327 = vand.u32 %v1183, 4294901760
    %v1328 = vsub.f32 %v1183, %v1327
    %v1329 = vand.u32 %v1328, 4294901760
    %v1330 = vsub.f32 %v1328, %v1329
    %v1331 = vand.u32 %v1330, 4294901760
    %1332 = vmatpush1.xpose.msra.mxu0 %v1331
    %1333 = vmatprep.subr.mxu0 0.0
    %v1334 = vand.u32 %v1180, 4294901760
    %v1335 = vsub.f32 %v1180, %v1334
    %v1336 = vand.u32 %v1335, 4294901760
    %v1337 = vsub.f32 %v1335, %v1336
    %v1338 = vand.u32 %v1337, 4294901760
    %1339 = vmatpush1.xpose.msra.mxu0 %v1338
    %1340 = vmatprep.subr.mxu0 0.0
    %v1341 = vand.u32 %v1177, 4294901760
    %v1342 = vsub.f32 %v1177, %v1341
    %v1343 = vand.u32 %v1342, 4294901760
    %v1344 = vsub.f32 %v1342, %v1343
    %v1345 = vand.u32 %v1344, 4294901760
    %1346 = vmatpush1.xpose.msra.mxu0 %v1345
    %1347 = vmatprep.subr.mxu0 0.0
    %v1348 = vand.u32 %v1174, 4294901760
    %v1349 = vsub.f32 %v1174, %v1348
    %v1350 = vand.u32 %v1349, 4294901760
    %v1351 = vsub.f32 %v1349, %v1350
    %v1352 = vand.u32 %v1351, 4294901760
    %1353 = vmatpush1.xpose.msra.mxu0 %v1352
    %1354 = vmatprep.subr.mxu0 0.0
    %v1355 = vand.u32 %v1171, 4294901760
    %v1356 = vsub.f32 %v1171, %v1355
    %v1357 = vand.u32 %v1356, 4294901760
    %v1358 = vsub.f32 %v1356, %v1357
    %v1359 = vand.u32 %v1358, 4294901760
    %1360 = vmatpush1.xpose.msra.mxu0 %v1359
    %1361 = vmatprep.subr.mxu0 0.0
    %v1362 = vand.u32 %v1168, 4294901760
    %v1363 = vsub.f32 %v1168, %v1362
    %v1364 = vand.u32 %v1363, 4294901760
    %v1365 = vsub.f32 %v1363, %v1364
    %v1366 = vand.u32 %v1365, 4294901760
    %1367 = vmatpush1.xpose.msra.mxu0 %v1366
    %1368 = vmatprep.subr.mxu0 0.0
    %v1369 = vand.u32 %v1165, 4294901760
    %v1370 = vsub.f32 %v1165, %v1369
    %v1371 = vand.u32 %v1370, 4294901760
    %v1372 = vsub.f32 %v1370, %v1371
    %v1373 = vand.u32 %v1372, 4294901760
    %1374 = vmatpush1.xpose.msra.mxu0 %v1373
    %1375 = vmatprep.subr.mxu0 0.0
    %v1376 = vand.u32 %v1162, 4294901760
    %v1377 = vsub.f32 %v1162, %v1376
    %v1378 = vand.u32 %v1377, 4294901760
    %v1379 = vsub.f32 %v1377, %v1378
    %v1380 = vand.u32 %v1379, 4294901760
    %1381 = vmatpush1.xpose.msra.mxu0 %v1380
    %1382 = vmatprep.subr.mxu0 0.0
    %v1383 = vand.u32 %v1159, 4294901760
    %v1384 = vsub.f32 %v1159, %v1383
    %v1385 = vand.u32 %v1384, 4294901760
    %v1386 = vsub.f32 %v1384, %v1385
    %v1387 = vand.u32 %v1386, 4294901760
    %1388 = vmatpush1.xpose.msra.mxu0 %v1387
    %1389 = vmatprep.subr.mxu0 0.0
    %v1390 = vand.u32 %v1156, 4294901760
    %v1391 = vsub.f32 %v1156, %v1390
    %v1392 = vand.u32 %v1391, 4294901760
    %v1393 = vsub.f32 %v1391, %v1392
    %v1394 = vand.u32 %v1393, 4294901760
    %1395 = vmatpush1.xpose.msra.mxu0 %v1394
    %1396 = vmatprep.subr.mxu0 0.0
    %v1397 = vand.u32 %v1153, 4294901760
    %v1398 = vsub.f32 %v1153, %v1397
    %v1399 = vand.u32 %v1398, 4294901760
    %v1400 = vsub.f32 %v1398, %v1399
    %v1401 = vand.u32 %v1400, 4294901760
    %1402 = vmatpush1.xpose.msra.mxu0 %v1401
    %1403 = vmatprep.subr.mxu0 0.0
    %1404 = vmatpush2.xpose.msra.mxu0 0.0
    %1405 = vmatprep.subr.mxu0 0.0
    %1406 = vmatpush2.xpose.msra.mxu0 0.0
    %1407 = vmatprep.subr.mxu0 0.0
    %1408 = vmatpush2.xpose.msra.mxu0 0.0
    %1409 = vmatprep.subr.mxu0 0.0
    %1410 = vmatpush2.xpose.msra.mxu0 0.0
    %1411 = vmatprep.subr.mxu0 0.0
    %1412 = vmatpush2.xpose.msra.mxu0 0.0
    %1413 = vmatprep.subr.mxu0 0.0
    %1414 = vmatpush2.xpose.msra.mxu0 0.0
    %1415 = vmatprep.subr.mxu0 0.0
    %1416 = vmatpush2.xpose.msra.mxu0 0.0
    %1417 = vmatprep.subr.mxu0 0.0
    %1418 = vmatpush2.xpose.msra.mxu0 0.0
    %1419 = vmatprep.subr.mxu0 0.0
    %1420 = vmatpush2.xpose.msra.mxu0 0.0
    %1421 = vmatprep.subr.mxu0 0.0
    %1422 = vmatpush2.xpose.msra.mxu0 0.0
    %1423 = vmatprep.subr.mxu0 0.0
    %1424 = vmatpush2.xpose.msra.mxu0 0.0
    %1425 = vmatprep.subr.mxu0 0.0
    %1426 = vmatpush2.xpose.msra.mxu0 0.0
    %1427 = vmatprep.subr.mxu0 0.0
    %1428 = vmatpush2.xpose.msra.mxu0 0.0
    %1429 = vmatprep.subr.mxu0 0.0
    %1430 = vmatpush2.xpose.msra.mxu0 0.0
    %1431 = vmatprep.subr.mxu0 0.0
    %1432 = vmatpush2.xpose.msra.mxu0 0.0
    %1433 = vmatprep.subr.mxu0 0.0
    %1434 = vmatpush2.xpose.msra.mxu0 0.0
    %1435 = vmatprep.mubr.f32.mxu0 0.0
    %v1436 = vand.u32 %v1150, 4294901760
    %1437 = vmatmul.mubr.f32.gmra.mxu0 %v1436
    %v1438 = vpop.f32.mrf.mxu0
    %v1439 = vadd.f32 %v1288, %v1438
    %v1440 = vpop.f32.mrf.mxu0
    %1441 = vdwg.mxu0
    %1442 = vmatprep.subr.mxu0 0.0
    %v1443 = vand.u32 %v1198, 4294901760
    %v1444 = vsub.f32 %v1198, %v1443
    %1445 = vmatpush1.xpose.msra.mxu0 %v1444
    %1446 = vmatprep.subr.mxu0 0.0
    %v1447 = vand.u32 %v1195, 4294901760
    %v1448 = vsub.f32 %v1195, %v1447
    %1449 = vmatpush1.xpose.msra.mxu0 %v1448
    %1450 = vmatprep.subr.mxu0 0.0
    %v1451 = vand.u32 %v1192, 4294901760
    %v1452 = vsub.f32 %v1192, %v1451
    %1453 = vmatpush1.xpose.msra.mxu0 %v1452
    %1454 = vmatprep.subr.mxu0 0.0
    %v1455 = vand.u32 %v1189, 4294901760
    %v1456 = vsub.f32 %v1189, %v1455
    %1457 = vmatpush1.xpose.msra.mxu0 %v1456
    %1458 = vmatprep.subr.mxu0 0.0
    %v1459 = vand.u32 %v1186, 4294901760
    %v1460 = vsub.f32 %v1186, %v1459
    %1461 = vmatpush1.xpose.msra.mxu0 %v1460
    %1462 = vmatprep.subr.mxu0 0.0
    %v1463 = vand.u32 %v1183, 4294901760
    %v1464 = vsub.f32 %v1183, %v1463
    %1465 = vmatpush1.xpose.msra.mxu0 %v1464
    %1466 = vmatprep.subr.mxu0 0.0
    %v1467 = vand.u32 %v1180, 4294901760
    %v1468 = vsub.f32 %v1180, %v1467
    %1469 = vmatpush1.xpose.msra.mxu0 %v1468
    %1470 = vmatprep.subr.mxu0 0.0
    %v1471 = vand.u32 %v1177, 4294901760
    %v1472 = vsub.f32 %v1177, %v1471
    %1473 = vmatpush1.xpose.msra.mxu0 %v1472
    %1474 = vmatprep.subr.mxu0 0.0
    %v1475 = vand.u32 %v1174, 4294901760
    %v1476 = vsub.f32 %v1174, %v1475
    %1477 = vmatpush1.xpose.msra.mxu0 %v1476
    %1478 = vmatprep.subr.mxu0 0.0
    %v1479 = vand.u32 %v1171, 4294901760
    %v1480 = vsub.f32 %v1171, %v1479
    %1481 = vmatpush1.xpose.msra.mxu0 %v1480
    %1482 = vmatprep.subr.mxu0 0.0
    %v1483 = vand.u32 %v1168, 4294901760
    %v1484 = vsub.f32 %v1168, %v1483
    %1485 = vmatpush1.xpose.msra.mxu0 %v1484
    %1486 = vmatprep.subr.mxu0 0.0
    %v1487 = vand.u32 %v1165, 4294901760
    %v1488 = vsub.f32 %v1165, %v1487
    %1489 = vmatpush1.xpose.msra.mxu0 %v1488
    %1490 = vmatprep.subr.mxu0 0.0
    %v1491 = vand.u32 %v1162, 4294901760
    %v1492 = vsub.f32 %v1162, %v1491
    %1493 = vmatpush1.xpose.msra.mxu0 %v1492
    %1494 = vmatprep.subr.mxu0 0.0
    %v1495 = vand.u32 %v1159, 4294901760
    %v1496 = vsub.f32 %v1159, %v1495
    %1497 = vmatpush1.xpose.msra.mxu0 %v1496
    %1498 = vmatprep.subr.mxu0 0.0
    %v1499 = vand.u32 %v1156, 4294901760
    %v1500 = vsub.f32 %v1156, %v1499
    %1501 = vmatpush1.xpose.msra.mxu0 %v1500
    %1502 = vmatprep.subr.mxu0 0.0
    %v1503 = vand.u32 %v1153, 4294901760
    %v1504 = vsub.f32 %v1153, %v1503
    %1505 = vmatpush1.xpose.msra.mxu0 %v1504
    %1506 = vmatprep.subr.mxu0 0.0
    %1507 = vmatpush2.xpose.msra.mxu0 0.0
    %1508 = vmatprep.subr.mxu0 0.0
    %1509 = vmatpush2.xpose.msra.mxu0 0.0
    %1510 = vmatprep.subr.mxu0 0.0
    %1511 = vmatpush2.xpose.msra.mxu0 0.0
    %1512 = vmatprep.subr.mxu0 0.0
    %1513 = vmatpush2.xpose.msra.mxu0 0.0
    %1514 = vmatprep.subr.mxu0 0.0
    %1515 = vmatpush2.xpose.msra.mxu0 0.0
    %1516 = vmatprep.subr.mxu0 0.0
    %1517 = vmatpush2.xpose.msra.mxu0 0.0
    %1518 = vmatprep.subr.mxu0 0.0
    %1519 = vmatpush2.xpose.msra.mxu0 0.0
    %1520 = vmatprep.subr.mxu0 0.0
    %1521 = vmatpush2.xpose.msra.mxu0 0.0
    %1522 = vmatprep.subr.mxu0 0.0
    %1523 = vmatpush2.xpose.msra.mxu0 0.0
    %1524 = vmatprep.subr.mxu0 0.0
    %1525 = vmatpush2.xpose.msra.mxu0 0.0
    %1526 = vmatprep.subr.mxu0 0.0
    %1527 = vmatpush2.xpose.msra.mxu0 0.0
    %1528 = vmatprep.subr.mxu0 0.0
    %1529 = vmatpush2.xpose.msra.mxu0 0.0
    %1530 = vmatprep.subr.mxu0 0.0
    %1531 = vmatpush2.xpose.msra.mxu0 0.0
    %1532 = vmatprep.subr.mxu0 0.0
    %1533 = vmatpush2.xpose.msra.mxu0 0.0
    %1534 = vmatprep.subr.mxu0 0.0
    %1535 = vmatpush2.xpose.msra.mxu0 0.0
    %1536 = vmatprep.subr.mxu0 0.0
    %1537 = vmatpush2.xpose.msra.mxu0 0.0
    %1538 = vmatprep.mubr.f32.mxu0 0.0
    %v1539 = vand.u32 %v1150, 4294901760
    %v1540 = vsub.f32 %v1150, %v1539
    %1541 = vmatmul.mubr.f32.gmra.mxu0 %v1540
    %v1542 = vpop.f32.mrf.mxu0
    %v1543 = vadd.f32 %v1439, %v1542
    %v1544 = vpop.f32.mrf.mxu0
    %1545 = vdwg.mxu0
    %1546 = vmatprep.subr.mxu0 0.0
    %v1547 = vand.u32 %v1198, 4294901760
    %1548 = vmatpush1.xpose.msra.mxu0 %v1547
    %1549 = vmatprep.subr.mxu0 0.0
    %v1550 = vand.u32 %v1195, 4294901760
    %1551 = vmatpush1.xpose.msra.mxu0 %v1550
    %1552 = vmatprep.subr.mxu0 0.0
    %v1553 = vand.u32 %v1192, 4294901760
    %1554 = vmatpush1.xpose.msra.mxu0 %v1553
    %1555 = vmatprep.subr.mxu0 0.0
    %v1556 = vand.u32 %v1189, 4294901760
    %1557 = vmatpush1.xpose.msra.mxu0 %v1556
    %1558 = vmatprep.subr.mxu0 0.0
    %v1559 = vand.u32 %v1186, 4294901760
    %1560 = vmatpush1.xpose.msra.mxu0 %v1559
    %1561 = vmatprep.subr.mxu0 0.0
    %v1562 = vand.u32 %v1183, 4294901760
    %1563 = vmatpush1.xpose.msra.mxu0 %v1562
    %1564 = vmatprep.subr.mxu0 0.0
    %v1565 = vand.u32 %v1180, 4294901760
    %1566 = vmatpush1.xpose.msra.mxu0 %v1565
    %1567 = vmatprep.subr.mxu0 0.0
    %v1568 = vand.u32 %v1177, 4294901760
    %1569 = vmatpush1.xpose.msra.mxu0 %v1568
    %1570 = vmatprep.subr.mxu0 0.0
    %v1571 = vand.u32 %v1174, 4294901760
    %1572 = vmatpush1.xpose.msra.mxu0 %v1571
    %1573 = vmatprep.subr.mxu0 0.0
    %v1574 = vand.u32 %v1171, 4294901760
    %1575 = vmatpush1.xpose.msra.mxu0 %v1574
    %1576 = vmatprep.subr.mxu0 0.0
    %v1577 = vand.u32 %v1168, 4294901760
    %1578 = vmatpush1.xpose.msra.mxu0 %v1577
    %1579 = vmatprep.subr.mxu0 0.0
    %v1580 = vand.u32 %v1165, 4294901760
    %1581 = vmatpush1.xpose.msra.mxu0 %v1580
    %1582 = vmatprep.subr.mxu0 0.0
    %v1583 = vand.u32 %v1162, 4294901760
    %1584 = vmatpush1.xpose.msra.mxu0 %v1583
    %1585 = vmatprep.subr.mxu0 0.0
    %v1586 = vand.u32 %v1159, 4294901760
    %1587 = vmatpush1.xpose.msra.mxu0 %v1586
    %1588 = vmatprep.subr.mxu0 0.0
    %v1589 = vand.u32 %v1156, 4294901760
    %1590 = vmatpush1.xpose.msra.mxu0 %v1589
    %1591 = vmatprep.subr.mxu0 0.0
    %v1592 = vand.u32 %v1153, 4294901760
    %1593 = vmatpush1.xpose.msra.mxu0 %v1592
    %1594 = vmatprep.subr.mxu0 0.0
    %1595 = vmatpush2.xpose.msra.mxu0 0.0
    %1596 = vmatprep.subr.mxu0 0.0
    %1597 = vmatpush2.xpose.msra.mxu0 0.0
    %1598 = vmatprep.subr.mxu0 0.0
    %1599 = vmatpush2.xpose.msra.mxu0 0.0
    %1600 = vmatprep.subr.mxu0 0.0
    %1601 = vmatpush2.xpose.msra.mxu0 0.0
    %1602 = vmatprep.subr.mxu0 0.0
    %1603 = vmatpush2.xpose.msra.mxu0 0.0
    %1604 = vmatprep.subr.mxu0 0.0
    %1605 = vmatpush2.xpose.msra.mxu0 0.0
    %1606 = vmatprep.subr.mxu0 0.0
    %1607 = vmatpush2.xpose.msra.mxu0 0.0
    %1608 = vmatprep.subr.mxu0 0.0
    %1609 = vmatpush2.xpose.msra.mxu0 0.0
    %1610 = vmatprep.subr.mxu0 0.0
    %1611 = vmatpush2.xpose.msra.mxu0 0.0
    %1612 = vmatprep.subr.mxu0 0.0
    %1613 = vmatpush2.xpose.msra.mxu0 0.0
    %1614 = vmatprep.subr.mxu0 0.0
    %1615 = vmatpush2.xpose.msra.mxu0 0.0
    %1616 = vmatprep.subr.mxu0 0.0
    %1617 = vmatpush2.xpose.msra.mxu0 0.0
    %1618 = vmatprep.subr.mxu0 0.0
    %1619 = vmatpush2.xpose.msra.mxu0 0.0
    %1620 = vmatprep.subr.mxu0 0.0
    %1621 = vmatpush2.xpose.msra.mxu0 0.0
    %1622 = vmatprep.subr.mxu0 0.0
    %1623 = vmatpush2.xpose.msra.mxu0 0.0
    %1624 = vmatprep.subr.mxu0 0.0
    %1625 = vmatpush2.xpose.msra.mxu0 0.0
    %1626 = vmatprep.mubr.f32.mxu0 0.0
    %v1627 = vand.u32 %v1150, 4294901760
    %v1628 = vsub.f32 %v1150, %v1627
    %v1629 = vand.u32 %v1628, 4294901760
    %1630 = vmatmul.mubr.f32.gmra.mxu0 %v1629
    %v1631 = vpop.f32.mrf.mxu0
    %v1632 = vadd.f32 %v1543, %v1631
    %v1633 = vpop.f32.mrf.mxu0
    %1634 = vdwg.mxu0
    %1635 = vmatprep.subr.mxu0 0.0
    %v1636 = vand.u32 %v1198, 4294901760
    %v1637 = vsub.f32 %v1198, %v1636
    %v1638 = vand.u32 %v1637, 4294901760
    %1639 = vmatpush1.xpose.msra.mxu0 %v1638
    %1640 = vmatprep.subr.mxu0 0.0
    %v1641 = vand.u32 %v1195, 4294901760
    %v1642 = vsub.f32 %v1195, %v1641
    %v1643 = vand.u32 %v1642, 4294901760
    %1644 = vmatpush1.xpose.msra.mxu0 %v1643
    %1645 = vmatprep.subr.mxu0 0.0
    %v1646 = vand.u32 %v1192, 4294901760
    %v1647 = vsub.f32 %v1192, %v1646
    %v1648 = vand.u32 %v1647, 4294901760
    %1649 = vmatpush1.xpose.msra.mxu0 %v1648
    %1650 = vmatprep.subr.mxu0 0.0
    %v1651 = vand.u32 %v1189, 4294901760
    %v1652 = vsub.f32 %v1189, %v1651
    %v1653 = vand.u32 %v1652, 4294901760
    %1654 = vmatpush1.xpose.msra.mxu0 %v1653
    %1655 = vmatprep.subr.mxu0 0.0
    %v1656 = vand.u32 %v1186, 4294901760
    %v1657 = vsub.f32 %v1186, %v1656
    %v1658 = vand.u32 %v1657, 4294901760
    %1659 = vmatpush1.xpose.msra.mxu0 %v1658
    %1660 = vmatprep.subr.mxu0 0.0
    %v1661 = vand.u32 %v1183, 4294901760
    %v1662 = vsub.f32 %v1183, %v1661
    %v1663 = vand.u32 %v1662, 4294901760
    %1664 = vmatpush1.xpose.msra.mxu0 %v1663
    %1665 = vmatprep.subr.mxu0 0.0
    %v1666 = vand.u32 %v1180, 4294901760
    %v1667 = vsub.f32 %v1180, %v1666
    %v1668 = vand.u32 %v1667, 4294901760
    %1669 = vmatpush1.xpose.msra.mxu0 %v1668
    %1670 = vmatprep.subr.mxu0 0.0
    %v1671 = vand.u32 %v1177, 4294901760
    %v1672 = vsub.f32 %v1177, %v1671
    %v1673 = vand.u32 %v1672, 4294901760
    %1674 = vmatpush1.xpose.msra.mxu0 %v1673
    %1675 = vmatprep.subr.mxu0 0.0
    %v1676 = vand.u32 %v1174, 4294901760
    %v1677 = vsub.f32 %v1174, %v1676
    %v1678 = vand.u32 %v1677, 4294901760
    %1679 = vmatpush1.xpose.msra.mxu0 %v1678
    %1680 = vmatprep.subr.mxu0 0.0
    %v1681 = vand.u32 %v1171, 4294901760
    %v1682 = vsub.f32 %v1171, %v1681
    %v1683 = vand.u32 %v1682, 4294901760
    %1684 = vmatpush1.xpose.msra.mxu0 %v1683
    %1685 = vmatprep.subr.mxu0 0.0
    %v1686 = vand.u32 %v1168, 4294901760
    %v1687 = vsub.f32 %v1168, %v1686
    %v1688 = vand.u32 %v1687, 4294901760
    %1689 = vmatpush1.xpose.msra.mxu0 %v1688
    %1690 = vmatprep.subr.mxu0 0.0
    %v1691 = vand.u32 %v1165, 4294901760
    %v1692 = vsub.f32 %v1165, %v1691
    %v1693 = vand.u32 %v1692, 4294901760
    %1694 = vmatpush1.xpose.msra.mxu0 %v1693
    %1695 = vmatprep.subr.mxu0 0.0
    %v1696 = vand.u32 %v1162, 4294901760
    %v1697 = vsub.f32 %v1162, %v1696
    %v1698 = vand.u32 %v1697, 4294901760
    %1699 = vmatpush1.xpose.msra.mxu0 %v1698
    %1700 = vmatprep.subr.mxu0 0.0
    %v1701 = vand.u32 %v1159, 4294901760
    %v1702 = vsub.f32 %v1159, %v1701
    %v1703 = vand.u32 %v1702, 4294901760
    %1704 = vmatpush1.xpose.msra.mxu0 %v1703
    %1705 = vmatprep.subr.mxu0 0.0
    %v1706 = vand.u32 %v1156, 4294901760
    %v1707 = vsub.f32 %v1156, %v1706
    %v1708 = vand.u32 %v1707, 4294901760
    %1709 = vmatpush1.xpose.msra.mxu0 %v1708
    %1710 = vmatprep.subr.mxu0 0.0
    %v1711 = vand.u32 %v1153, 4294901760
    %v1712 = vsub.f32 %v1153, %v1711
    %v1713 = vand.u32 %v1712, 4294901760
    %1714 = vmatpush1.xpose.msra.mxu0 %v1713
    %1715 = vmatprep.subr.mxu0 0.0
    %1716 = vmatpush2.xpose.msra.mxu0 0.0
    %1717 = vmatprep.subr.mxu0 0.0
    %1718 = vmatpush2.xpose.msra.mxu0 0.0
    %1719 = vmatprep.subr.mxu0 0.0
    %1720 = vmatpush2.xpose.msra.mxu0 0.0
    %1721 = vmatprep.subr.mxu0 0.0
    %1722 = vmatpush2.xpose.msra.mxu0 0.0
    %1723 = vmatprep.subr.mxu0 0.0
    %1724 = vmatpush2.xpose.msra.mxu0 0.0
    %1725 = vmatprep.subr.mxu0 0.0
    %1726 = vmatpush2.xpose.msra.mxu0 0.0
    %1727 = vmatprep.subr.mxu0 0.0
    %1728 = vmatpush2.xpose.msra.mxu0 0.0
    %1729 = vmatprep.subr.mxu0 0.0
    %1730 = vmatpush2.xpose.msra.mxu0 0.0
    %1731 = vmatprep.subr.mxu0 0.0
    %1732 = vmatpush2.xpose.msra.mxu0 0.0
    %1733 = vmatprep.subr.mxu0 0.0
    %1734 = vmatpush2.xpose.msra.mxu0 0.0
    %1735 = vmatprep.subr.mxu0 0.0
    %1736 = vmatpush2.xpose.msra.mxu0 0.0
    %1737 = vmatprep.subr.mxu0 0.0
    %1738 = vmatpush2.xpose.msra.mxu0 0.0
    %1739 = vmatprep.subr.mxu0 0.0
    %1740 = vmatpush2.xpose.msra.mxu0 0.0
    %1741 = vmatprep.subr.mxu0 0.0
    %1742 = vmatpush2.xpose.msra.mxu0 0.0
    %1743 = vmatprep.subr.mxu0 0.0
    %1744 = vmatpush2.xpose.msra.mxu0 0.0
    %1745 = vmatprep.subr.mxu0 0.0
    %1746 = vmatpush2.xpose.msra.mxu0 0.0
    %1747 = vmatprep.mubr.f32.mxu0 0.0
    %v1748 = vand.u32 %v1150, 4294901760
    %1749 = vmatmul.mubr.f32.gmra.mxu0 %v1748
    %v1750 = vpop.f32.mrf.mxu0
    %v1751 = vadd.f32 %v1632, %v1750
    %v1752 = vpop.f32.mrf.mxu0
    %1753 = vdwg.mxu0
    %1754 = vmatprep.subr.mxu0 0.0
    %v1755 = vand.u32 %v1198, 4294901760
    %1756 = vmatpush1.xpose.msra.mxu0 %v1755
    %1757 = vmatprep.subr.mxu0 0.0
    %v1758 = vand.u32 %v1195, 4294901760
    %1759 = vmatpush1.xpose.msra.mxu0 %v1758
    %1760 = vmatprep.subr.mxu0 0.0
    %v1761 = vand.u32 %v1192, 4294901760
    %1762 = vmatpush1.xpose.msra.mxu0 %v1761
    %1763 = vmatprep.subr.mxu0 0.0
    %v1764 = vand.u32 %v1189, 4294901760
    %1765 = vmatpush1.xpose.msra.mxu0 %v1764
    %1766 = vmatprep.subr.mxu0 0.0
    %v1767 = vand.u32 %v1186, 4294901760
    %1768 = vmatpush1.xpose.msra.mxu0 %v1767
    %1769 = vmatprep.subr.mxu0 0.0
    %v1770 = vand.u32 %v1183, 4294901760
    %1771 = vmatpush1.xpose.msra.mxu0 %v1770
    %1772 = vmatprep.subr.mxu0 0.0
    %v1773 = vand.u32 %v1180, 4294901760
    %1774 = vmatpush1.xpose.msra.mxu0 %v1773
    %1775 = vmatprep.subr.mxu0 0.0
    %v1776 = vand.u32 %v1177, 4294901760
    %1777 = vmatpush1.xpose.msra.mxu0 %v1776
    %1778 = vmatprep.subr.mxu0 0.0
    %v1779 = vand.u32 %v1174, 4294901760
    %1780 = vmatpush1.xpose.msra.mxu0 %v1779
    %1781 = vmatprep.subr.mxu0 0.0
    %v1782 = vand.u32 %v1171, 4294901760
    %1783 = vmatpush1.xpose.msra.mxu0 %v1782
    %1784 = vmatprep.subr.mxu0 0.0
    %v1785 = vand.u32 %v1168, 4294901760
    %1786 = vmatpush1.xpose.msra.mxu0 %v1785
    %1787 = vmatprep.subr.mxu0 0.0
    %v1788 = vand.u32 %v1165, 4294901760
    %1789 = vmatpush1.xpose.msra.mxu0 %v1788
    %1790 = vmatprep.subr.mxu0 0.0
    %v1791 = vand.u32 %v1162, 4294901760
    %1792 = vmatpush1.xpose.msra.mxu0 %v1791
    %1793 = vmatprep.subr.mxu0 0.0
    %v1794 = vand.u32 %v1159, 4294901760
    %1795 = vmatpush1.xpose.msra.mxu0 %v1794
    %1796 = vmatprep.subr.mxu0 0.0
    %v1797 = vand.u32 %v1156, 4294901760
    %1798 = vmatpush1.xpose.msra.mxu0 %v1797
    %1799 = vmatprep.subr.mxu0 0.0
    %v1800 = vand.u32 %v1153, 4294901760
    %1801 = vmatpush1.xpose.msra.mxu0 %v1800
    %1802 = vmatprep.subr.mxu0 0.0
    %1803 = vmatpush2.xpose.msra.mxu0 0.0
    %1804 = vmatprep.subr.mxu0 0.0
    %1805 = vmatpush2.xpose.msra.mxu0 0.0
    %1806 = vmatprep.subr.mxu0 0.0
    %1807 = vmatpush2.xpose.msra.mxu0 0.0
    %1808 = vmatprep.subr.mxu0 0.0
    %1809 = vmatpush2.xpose.msra.mxu0 0.0
    %1810 = vmatprep.subr.mxu0 0.0
    %1811 = vmatpush2.xpose.msra.mxu0 0.0
    %1812 = vmatprep.subr.mxu0 0.0
    %1813 = vmatpush2.xpose.msra.mxu0 0.0
    %1814 = vmatprep.subr.mxu0 0.0
    %1815 = vmatpush2.xpose.msra.mxu0 0.0
    %1816 = vmatprep.subr.mxu0 0.0
    %1817 = vmatpush2.xpose.msra.mxu0 0.0
    %1818 = vmatprep.subr.mxu0 0.0
    %1819 = vmatpush2.xpose.msra.mxu0 0.0
    %1820 = vmatprep.subr.mxu0 0.0
    %1821 = vmatpush2.xpose.msra.mxu0 0.0
    %1822 = vmatprep.subr.mxu0 0.0
    %1823 = vmatpush2.xpose.msra.mxu0 0.0
    %1824 = vmatprep.subr.mxu0 0.0
    %1825 = vmatpush2.xpose.msra.mxu0 0.0
    %1826 = vmatprep.subr.mxu0 0.0
    %1827 = vmatpush2.xpose.msra.mxu0 0.0
    %1828 = vmatprep.subr.mxu0 0.0
    %1829 = vmatpush2.xpose.msra.mxu0 0.0
    %1830 = vmatprep.subr.mxu0 0.0
    %1831 = vmatpush2.xpose.msra.mxu0 0.0
    %1832 = vmatprep.subr.mxu0 0.0
    %1833 = vmatpush2.xpose.msra.mxu0 0.0
    %1834 = vmatprep.mubr.f32.mxu0 0.0
    %v1835 = vand.u32 %v1150, 4294901760
    %1836 = vmatmul.mubr.f32.gmra.mxu0 %v1835
    %v1837 = vpop.f32.mrf.mxu0
    %v1838 = vadd.f32 %v1751, %v1837
    %v1839 = vpop.f32.mrf.mxu0
    %1840 = vdwg.mxu0
    %v1842 = vcombine.high %v1838, %v1838
    %v1844 = vunpack.c.l.s4 1966171168
    %v1845 = vunpack.c.0.s8 %v1844
    %v1846 = vlaneseq
    %v1847 = vshrl.u32 %v1846, 7
    %v1848 = vsub.s32 %v1845, %v1847
    %v1849 = vrot.slane %v1838, %v1848
    %v1851 = vunpack.c.l.s4 1966171168
    %v1852 = vunpack.c.0.s8 %v1851
    %v1853 = vlaneseq
    %v1854 = vshrl.u32 %v1853, 7
    %v1855 = vsub.s32 %v1852, %v1854
    %v1856 = vrot.slane %v1842, %v1855
    %v1857 = vcombine.high %v1849, %v1849
    %v1858 = vcombine.high %v1856, %v1856
    %v1860 = vunpack.c.l.s4 1966171168
    %v1861 = vunpack.c.0.s8 %v1860
    %v1862 = vlaneseq
    %v1863 = vshrl.u32 %v1862, 7
    %v1864 = vsub.s32 %v1861, %v1863
    %v1865 = vrot.slane %v1849, %v1864
    %v1867 = vunpack.c.l.s4 1966171168
    %v1868 = vunpack.c.0.s8 %v1867
    %v1869 = vlaneseq
    %v1870 = vshrl.u32 %v1869, 7
    %v1871 = vsub.s32 %v1868, %v1870
    %v1872 = vrot.slane %v1856, %v1871
    %v1874 = vunpack.c.l.s4 1966171168
    %v1875 = vunpack.c.0.s8 %v1874
    %v1876 = vlaneseq
    %v1877 = vshrl.u32 %v1876, 7
    %v1878 = vsub.s32 %v1875, %v1877
    %v1879 = vrot.slane %v1857, %v1878
    %v1881 = vunpack.c.l.s4 1966171168
    %v1882 = vunpack.c.0.s8 %v1881
    %v1883 = vlaneseq
    %v1884 = vshrl.u32 %v1883, 7
    %v1885 = vsub.s32 %v1882, %v1884
    %v1886 = vrot.slane %v1858, %v1885
    %v1887 = vcombine.high %v1865, %v1865
    %v1888 = vcombine.high %v1872, %v1872
    %v1889 = vcombine.high %v1879, %v1879
    %v1890 = vcombine.high %v1886, %v1886
    %1899 = vst [vmem:[#allocation3 + $0x1] sm:$0x1] %v1865
    %1900 = vst [vmem:[#allocation3 + $0x3] sm:$0x1] %v1879
    %1901 = vst [vmem:[#allocation3 + $0x5] sm:$0x1] %v1887
    %1902 = vst [vmem:[#allocation3 + $0x7] sm:$0x1] %v1889
    %1903 = vst [vmem:[#allocation3 + $0x9] sm:$0x1] %v1872
    %1904 = vst [vmem:[#allocation3 + $0xb] sm:$0x1] %v1886
    %1905 = vst [vmem:[#allocation3 + $0xd] sm:$0x1] %v1888
    %1906 = vst [vmem:[#allocation3 + $0xf] sm:$0x1] %v1890
    %s1907 = smul.u32 0, 8
    %v1908 = vld [vmem:[%s3] sm:$0x3]
    %v1909 = vld [vmem:[#allocation4] sm:$0x3]
    loop: start=0, step=1, limit=8
    $region26: #{tpu_custom_call.1} parent=1 // loop_pre_header
      _
    $region27: #{tpu_custom_call.1} parent=1 // loop_header
      %s1911 = sphi 0, %s1915
      %p1912 = scmp.ge.s32.totalorder %s1911, 8
      %v1916 = vphi %v1909, %v1953
    $region28: #{tpu_custom_call.1} parent=1 // loop_header_branch
      %1914 = sbr.rel (%p1912) target = $region32
    $region29: #{tpu_custom_call.1} parent=1 // loop_body
      %s1917 = smul.u32 %s1911, 2
      %s1918 = scalar_lea.vmem [#allocation3], %s1917
      %v1919 = vld [vmem:[%s1918] sm:$0x3]
      %vm1920 = vcmp.ge.s32.totalorder %v33, 1
      %1921 = vrot.lane.b32.xlu0 %v1916, 1
      %v1922 = vpop.permute.xlu0 %1921
      %v1923 = vsel %vm1920, %v1922, -1e+30
      %1924 = vrot.lane.b32.xlu0 %v1916, 2
      %v1925 = vpop.permute.xlu0 %1924
      %v1926 = vsel %vm57, %v1925, -1e+30
      %v1927 = vmax.f32 %v1916, %v1923
      %v1928 = vmax.f32 %v1927, %v1926
      %v1929 = vsub.f32 %v1916, %v1928
      %v1930 = vmul.f32 %v1929, 1.442695
      %v1931 = vpow.pop %v1930
      %v1932 = vsub.f32 %v1923, %v1928
      %v1933 = vmul.f32 %v1932, 1.442695
      %v1934 = vpow.pop %v1933
      %v1935 = vadd.f32 %v1931, %v1934
      %v1936 = vsub.f32 %v1926, %v1928
      %v1937 = vmul.f32 %v1936, 1.442695
      %v1938 = vpow.pop %v1937
      %v1939 = vadd.f32 %v1935, %v1938
      %v1940 = vlog2.pop %v1939
      %v1941 = vmul.f32 %v1940, 0.6931472
      %v1942 = vadd.f32 %v1928, %v1941
      %v1943 = vadd.f32 %v1919, %v1942
      %v1944 = vsel %vm40, %v1943, -1e+30
      %s1945 = sadd.s32 %s1907, %s1911
      %v1946 = vstv %s1945
      %vm1947 = vcmp.lt.s32.totalorder %v1946, %v1908
      %v1948 = vsel %vm1947, 1, 0
      %1949 = vset.pattern.permute.xlu0 0
      %1950 = vperm.xlu0 %1949, %v1948
      %v1951 = vpop.permute.xlu0 %1950
      %vm1952 = vcmp.eq.s32.totalorder %v1951, 1
      %v1953 = vsel %vm1952, %v1944, %v1916
    $region30: #{tpu_custom_call.1} parent=1 // loop_footer
      %s1915 = sadd.s32 1, %s1911
    $region31: #{tpu_custom_call.1} parent=1 // loop_footer_branch
      %1910 = sbr.rel target = $region27
    $region32: #{tpu_custom_call.1} parent=1 // loop_exit
      _
    %1954 = vst [vmem:[#allocation4] sm:$0x3] %v1916
    // Predicated region
    $region33: #{tpu_custom_call.1} parent=1 // pred_check
      %p1955 = pneg %p58
    $region34: #{tpu_custom_call.1} parent=1 // pred_check_branch
      %1957 = sbr.rel (%p1955) target = $region36
    $region35: #{tpu_custom_call.1} parent=1 // pred_region
      %v1958 = vsel %vm50, %v1916, -1e+30
      %vm1959 = vcmask 1041408
      %v1960 = vsel %vm1959, %v1958, -inf
      %1961 = vmax.xlane.f32.xlu0 %v1960
      %v1962 = vpop.xlane.xlu0 %1961
      %v1963 = vsub.f32 %v1958, %v1962
      %v1964 = vmul.f32 %v1963, 1.442695
      %v1965 = vpow.pop %v1964
      %v1966 = vsel %vm1959, %v1965, 0.0
      %1967 = vadd.xlane.f32.xlu0 %v1966
      %v1968 = vpop.xlane.xlu0 %1967
      %v1969 = vlog2.pop %v1968
      %v1970 = vmul.f32 %v1969, 0.6931472
      %v1971 = vadd.f32 %v1962, %v1970
      %v1972 = vsub.f32 0.0, %v1971
      %vm1973 = vcmask 1024
      %1974 = vst.msk [vmem:[%s4] sm:$0x3] %vm1973, %v1972
    $region36: #{tpu_custom_call.1} parent=1 // pred_fallthru
      _
    // Predicated region
    $region37: #{tpu_custom_call.1} parent=1 // pred_check
      _
    $region38: #{tpu_custom_call.1} parent=1 // pred_check_branch
      %1976 = sbr.rel (0) target = $region40
    $region39: #{tpu_custom_call.1} parent=1 // pred_region
      _
    $region40: #{tpu_custom_call.1} parent=1 // pred_fallthru
      _
    // Predicated region
    $region41: #{tpu_custom_call.1} parent=1 // pred_check
      _
    $region42: #{tpu_custom_call.1} parent=1 // pred_check_branch
      %1978 = sbr.rel (0) target = $region44
    $region43: #{tpu_custom_call.1} parent=1 // pred_region
      _
    $region44: #{tpu_custom_call.1} parent=1 // pred_fallthru
      _
    %1979 = vsyncpa [#allocation6], 1

</llo_original>
